<compile_context>
chip_gen: v7x
topology: tpu7x:2x2x1
jax: 0.10.0
libtpu: 0.0.40
codegen_flags: <defaults>
</compile_context>

<pallas_src>
import math
import functools

import jax
import jax.numpy as jnp
from jax.experimental import pallas as pl
from jax.experimental.pallas import tpu as pltpu


def _mha_kernel(*refs, num_heads, d_k, fused_qkv):
    """One grid step = one (batch, query-tile).  All MXU matmuls: bf16 in, f32 acc."""
    bf16 = jnp.bfloat16
    f32 = jnp.float32

    if fused_qkv:
        # Self-attention: one activation ref, one (D, 3D) weight, one wide matmul.
        x_ref, w_qkv_ref, b_qkv_ref, wo_ref, bo_ref, out_ref = refs
        D = x_ref.shape[2]
        x = x_ref[0].astype(bf16)                                        # (S, D)
        qkv = jnp.dot(x, w_qkv_ref[...], preferred_element_type=f32) + b_qkv_ref[...]
        # Static lane slices of the (S, 3D) result (128-aligned for production D).
        q = qkv[:, :D]
        k = qkv[:, D:2 * D]
        v = qkv[:, 2 * D:]
    else:
        # General path: distinct query / key / value activations.
        q_in_ref, k_in_ref, v_in_ref, w_qkv_ref, b_qkv_ref, wo_ref, bo_ref, out_ref = refs
        q = jnp.dot(q_in_ref[0].astype(bf16), w_qkv_ref[0],
                    preferred_element_type=f32) + b_qkv_ref[0]
        k = jnp.dot(k_in_ref[0].astype(bf16), w_qkv_ref[1],
                    preferred_element_type=f32) + b_qkv_ref[1]
        v = jnp.dot(v_in_ref[0].astype(bf16), w_qkv_ref[2],
                    preferred_element_type=f32) + b_qkv_ref[2]

    s_q = q.shape[0]
    s_kv = k.shape[0]

    # Fold the 1/sqrt(d_k) scale into q once, in f32, before the bf16 cast.
    q = q * (1.0 / math.sqrt(d_k))

    # Copy-free head split: (S, D) -> (S, H, d_k); einsum carries the head axis.
    qh = q.reshape(s_q, num_heads, d_k).astype(bf16)
    kh = k.reshape(s_kv, num_heads, d_k).astype(bf16)
    vh = v.reshape(s_kv, num_heads, d_k).astype(bf16)

    # scores[h, q, k] = q_h . k_h  (contraction on d_k), f32 accumulation.
    scores = jnp.einsum('qhc,khc->hqk', qh, kh,
                        preferred_element_type=f32)                      # (H, Sq, Skv)

    # Numerically stable softmax over the key axis (f32 VPU math, EUP exp/recip).
    scores = scores - jnp.max(scores, axis=-1, keepdims=True)
    p = jnp.exp(scores)
    p = p * pl.reciprocal(jnp.sum(p, axis=-1, keepdims=True), approx=True)

    # Context comes back in (Sq, H, d_k) so the head merge is a plain reshape.
    ctx = jnp.einsum('hqk,khc->qhc', p.astype(bf16), vh,
                     preferred_element_type=f32)                          # (Sq, H, d_k)

    attn = ctx.reshape(s_q, num_heads * d_k).astype(bf16)                 # (Sq, D)
    out = jnp.dot(attn, wo_ref[...], preferred_element_type=f32) + bo_ref[...]
    out_ref[0] = out.astype(out_ref.dtype)


def _choose_q_tile(seq_len):
    """Query tile: whole sequence when small, else a <=256 divisor (8-aligned)."""
    if seq_len <= 256:
        return seq_len
    for t in (256, 128, 64, 32, 16, 8):
        if seq_len % t == 0:
            return t
    return seq_len


def multi_head_attention(query, key, value, params, *, num_heads):
    """query: (B, Sq, D); key/value: (B, Skv, D) float32.  params: PyTorch-layout."""
    B, Sq, D = query.shape
    _, Skv, _ = key.shape
    assert key.shape == value.shape
    assert D % num_heads == 0
    d_k = D // num_heads
    bf16 = jnp.bfloat16

    tq = _choose_q_tile(Sq)
    grid = (B, Sq // tq)

    # Fused QKV requires the whole sequence in one q-tile (K/V come from the same block).
    self_attn = (query is key) and (key is value) and grid[1] == 1

    # PyTorch Linear stores (out, in); kernel computes x @ W^T + b -> pre-transpose here.
    wo_t = params["wo"].T.astype(bf16)                                    # (D, D) bf16
    bo = params["bo"].reshape(1, D)                                       # (1, D) f32

    wo_spec = pl.BlockSpec((D, D), lambda b, i: (0, 0))
    bo_spec = pl.BlockSpec((1, D), lambda b, i: (0, 0))
    out_spec = pl.BlockSpec((1, tq, D), lambda b, i: (b, i, 0))

    kernel = functools.partial(_mha_kernel, num_heads=num_heads, d_k=d_k,
                               fused_qkv=self_attn)

    compiler_params = pltpu.CompilerParams(
        dimension_semantics=("parallel", "parallel"),   # batch x q-tile over TCs
        vmem_limit_bytes=48 * 1024 * 1024)              # v7x headroom; raise on v6e

    if self_attn:
        # One (D, 3D) bf16 weight + one (1, 3D) f32 bias -> single activation DMA,
        # single wide-N projection matmul per grid step.
        w_qkv = jnp.concatenate(
            [params["wq"].T, params["wk"].T, params["wv"].T], axis=1).astype(bf16)   # (D, 3D)
        b_qkv = jnp.concatenate(
            [params["bq"], params["bk"], params["bv"]]).reshape(1, 3 * D)            # (1, 3D)
        x_spec = pl.BlockSpec((1, Sq, D), lambda b, i: (b, 0, 0))
        in_specs = [x_spec,
                    pl.BlockSpec((D, 3 * D), lambda b, i: (0, 0)),
                    pl.BlockSpec((1, 3 * D), lambda b, i: (0, 0)),
                    wo_spec, bo_spec]
        operands = (query, w_qkv, b_qkv, wo_t, bo)
    else:
        # General (cross-attention / q-tiled) path: stacked weights, K/V full-resident
        # per batch element, Q tiled along the sequence.
        w_qkv = jnp.stack(
            [params["wq"].T, params["wk"].T, params["wv"].T]).astype(bf16)            # (3, D, D)
        b_qkv = jnp.stack(
            [params["bq"], params["bk"], params["bv"]]).reshape(3, 1, D)              # (3, 1, D)
        q_spec = pl.BlockSpec((1, tq, D), lambda b, i: (b, i, 0))
        kv_spec = pl.BlockSpec((1, Skv, D), lambda b, i: (b, 0, 0))
        in_specs = [q_spec, kv_spec, kv_spec,
                    pl.BlockSpec((3, D, D), lambda b, i: (0, 0, 0)),
                    pl.BlockSpec((3, 1, D), lambda b, i: (0, 0, 0)),
                    wo_spec, bo_spec]
        operands = (query, key, value, w_qkv, b_qkv, wo_t, bo)

    return pl.pallas_call(
        kernel,
        out_shape=jax.ShapeDtypeStruct((B, Sq, D), query.dtype),
        grid=grid,
        in_specs=in_specs,
        out_specs=out_spec,
        compiler_params=compiler_params,
    )(*operands)


def _reference_mha(query, key, value, params, *, num_heads):
    """Pure-JAX f32 reference matching the PyTorch forward (eval-mode dropout, no mask)."""
    B, Sq, D = query.shape
    d_k = D // num_heads

    def lin(x, w, b):
        return jnp.einsum("bsd,od->bso", x, w) + b

    q = lin(query, params["wq"], params["bq"]).reshape(B, -1, num_heads, d_k).transpose(0, 2, 1, 3)
    k = lin(key, params["wk"], params["bk"]).reshape(B, -1, num_heads, d_k).transpose(0, 2, 1, 3)
    v = lin(value, params["wv"], params["bv"]).reshape(B, -1, num_heads, d_k).transpose(0, 2, 1, 3)

    scores = jnp.einsum("bhqd,bhkd->bhqk", q, k) / math.sqrt(d_k)
    attn_w = jax.nn.softmax(scores, axis=-1)
    ctx = jnp.einsum("bhqk,bhkd->bhqd", attn_w, v)
    ctx = ctx.transpose(0, 2, 1, 3).reshape(B, Sq, D)
    return jnp.einsum("bsd,od->bso", ctx, params["wo"]) + params["bo"]


if __name__ == "__main__":
    B, S, D, H = 2, 8, 32, 4   # batch, seq, d_model, num_heads

    key0 = jax.random.PRNGKey(0)
    keys = jax.random.split(key0, 12)

    # Deterministic synthetic parameters (PyTorch Linear weight layout: (out, in)).
    params = {
        "wq": jax.random.normal(keys[0], (D, D), jnp.float32) * 0.1,
        "bq": jax.random.normal(keys[1], (D,), jnp.float32) * 0.1,
        "wk": jax.random.normal(keys[2], (D, D), jnp.float32) * 0.1,
        "bk": jax.random.normal(keys[3], (D,), jnp.float32) * 0.1,
        "wv": jax.random.normal(keys[4], (D, D), jnp.float32) * 0.1,
        "bv": jax.random.normal(keys[5], (D,), jnp.float32) * 0.1,
        "wo": jax.random.normal(keys[6], (D, D), jnp.float32) * 0.1,
        "bo": jax.random.normal(keys[7], (D,), jnp.float32) * 0.1,
    }

    # 1) Self-attention (GPT-2's use of this module): fused single-DMA QKV kernel.
    x = jax.random.normal(keys[8], (B, S, D), jnp.float32)
    out_self = jax.block_until_ready(multi_head_attention(x, x, x, params, num_heads=H))
    ref_self = _reference_mha(x, x, x, params, num_heads=H)
    assert out_self.shape == (B, S, D)
    # Tolerance accounts for bf16 MXU operands / approx reciprocal vs the f32 reference.
    assert jnp.allclose(out_self, ref_self, atol=5e-2, rtol=5e-2), "self-attn mismatch"

    # 2) Cross-attention (distinct query/key/value): general stacked-weight path.
    q_in = jax.random.normal(keys[9], (B, S, D), jnp.float32)
    k_in = jax.random.normal(keys[10], (B, S, D), jnp.float32)
    v_in = jax.random.normal(keys[11], (B, S, D), jnp.float32)
    out_x = jax.block_until_ready(multi_head_attention(q_in, k_in, v_in, params, num_heads=H))
    ref_x = _reference_mha(q_in, k_in, v_in, params, num_heads=H)
    assert out_x.shape == (B, S, D)
    assert jnp.allclose(out_x, ref_x, atol=5e-2, rtol=5e-2), "cross-attn mismatch"

    print("KERNEL_OK")
</pallas_src>

<mosaic_0001>
module attributes {stable_mosaic.version = 11 : i64} {
  func.func @_mha_kernel(%arg0: i32, %arg1: i32, %arg2: memref<1x8x32xf32, #tpu.memory_space<vmem>>, %arg3: memref<32x96xbf16, #tpu.memory_space<vmem>>, %arg4: memref<1x96xf32, #tpu.memory_space<vmem>>, %arg5: memref<32x32xbf16, #tpu.memory_space<vmem>>, %arg6: memref<1x32xf32, #tpu.memory_space<vmem>>, %arg7: memref<1x8x32xf32, #tpu.memory_space<vmem>>) attributes {dimension_semantics = [#tpu.dimension_semantics<parallel>, #tpu.dimension_semantics<parallel>], iteration_bounds = array<i64: 2, 1>, scalar_prefetch = 0 : i64, scratch_operands = 0 : i64, tpu.core_type = #tpu.core_type<tc>, window_params = [{transform_indices = @transform_0, window_bounds = array<i64: 1, 8, 32>}, {pipeline_mode = #tpu.pipeline_mode<synchronous>, transform_indices = @transform_1, window_bounds = array<i64: 32, 96>}, {pipeline_mode = #tpu.pipeline_mode<synchronous>, transform_indices = @transform_2, window_bounds = array<i64: 1, 96>}, {pipeline_mode = #tpu.pipeline_mode<synchronous>, transform_indices = @transform_3, window_bounds = array<i64: 32, 32>}, {pipeline_mode = #tpu.pipeline_mode<synchronous>, transform_indices = @transform_4, window_bounds = array<i64: 1, 32>}, {transform_indices = @transform_5, window_bounds = array<i64: 1, 8, 32>}]} {
    %c0 = arith.constant 0 : index
    %c0_0 = arith.constant 0 : index
    %c0_1 = arith.constant 0 : index
    %0 = vector.load %arg2[%c0, %c0_0, %c0_1] : memref<1x8x32xf32, #tpu.memory_space<vmem>>, vector<1x8x32xf32>
    %1 = vector.shape_cast %0 : vector<1x8x32xf32> to vector<8x32xf32>
    %2 = arith.truncf %1 : vector<8x32xf32> to vector<8x32xbf16>
    %c0_2 = arith.constant 0 : index
    %c0_3 = arith.constant 0 : index
    %3 = vector.load %arg3[%c0_2, %c0_3] : memref<32x96xbf16, #tpu.memory_space<vmem>>, vector<32x96xbf16>
    %cst = arith.constant dense<0.000000e+00> : vector<8x96xf32>
    %4 = tpu.matmul %2, %3, %cst {dimension_numbers = #tpu.dot_dimension_numbers<[1], [0], [0], [1], [0, 0, 1, 1], [], []>} : vector<8x32xbf16>, vector<32x96xbf16>, vector<8x96xf32> -> vector<8x96xf32>
    %c0_4 = arith.constant 0 : index
    %c0_5 = arith.constant 0 : index
    %5 = vector.load %arg4[%c0_4, %c0_5] : memref<1x96xf32, #tpu.memory_space<vmem>>, vector<1x96xf32>
    %6 = vector.broadcast %5 : vector<1x96xf32> to vector<8x96xf32>
    %7 = arith.addf %4, %6 : vector<8x96xf32>
    %8 = vector.extract_strided_slice %7 {offsets = [0, 0], sizes = [8, 32], strides = [1, 1]} : vector<8x96xf32> to vector<8x32xf32>
    %9 = vector.extract_strided_slice %7 {offsets = [0, 32], sizes = [8, 32], strides = [1, 1]} : vector<8x96xf32> to vector<8x32xf32>
    %10 = vector.extract_strided_slice %7 {offsets = [0, 64], sizes = [8, 32], strides = [1, 1]} : vector<8x96xf32> to vector<8x32xf32>
    %cst_6 = arith.constant 0.353553385 : f32
    %11 = vector.broadcast %cst_6 : f32 to vector<8x32xf32>
    %12 = arith.mulf %8, %11 : vector<8x32xf32>
    %13 = vector.shape_cast %12 : vector<8x32xf32> to vector<8x4x8xf32>
    %14 = arith.truncf %13 : vector<8x4x8xf32> to vector<8x4x8xbf16>
    %15 = vector.shape_cast %9 : vector<8x32xf32> to vector<8x4x8xf32>
    %16 = arith.truncf %15 : vector<8x4x8xf32> to vector<8x4x8xbf16>
    %17 = vector.shape_cast %10 : vector<8x32xf32> to vector<8x4x8xf32>
    %18 = arith.truncf %17 : vector<8x4x8xf32> to vector<8x4x8xbf16>
    "tpu.trace_start"() <{level = 10 : i32, message = "qhc,khc->hqk"}> : () -> ()
    %cst_7 = arith.constant dense<0.000000e+00> : vector<4x8x8xf32>
    %19 = tpu.matmul %14, %16, %cst_7 {dimension_numbers = #tpu.dot_dimension_numbers<[2], [2], [0], [0], [0, 1, 0, 0, 1, 0], [1], [1]>} : vector<8x4x8xbf16>, vector<8x4x8xbf16>, vector<4x8x8xf32> -> vector<4x8x8xf32>
    "tpu.trace_stop"() : () -> ()
    %cst_8 = arith.constant dense<0xFF800000> : vector<4x8xf32>
    %20 = vector.multi_reduction <maximumf>, %19, %cst_8 [2] : vector<4x8x8xf32> to vector<4x8xf32>
    %21 = vector.shape_cast %20 : vector<4x8xf32> to vector<4x8x1xf32>
    %22 = vector.broadcast %21 : vector<4x8x1xf32> to vector<4x8x8xf32>
    %23 = arith.subf %19, %22 : vector<4x8x8xf32>
    %24 = math.exp %23 : vector<4x8x8xf32>
    %cst_9 = arith.constant dense<0.000000e+00> : vector<4x8xf32>
    %25 = vector.multi_reduction <add>, %24, %cst_9 [2] : vector<4x8x8xf32> to vector<4x8xf32>
    %26 = vector.shape_cast %25 : vector<4x8xf32> to vector<4x8x1xf32>
    %27 = tpu.reciprocal %26 {approx = true} : vector<4x8x1xf32> -> vector<4x8x1xf32>
    %28 = vector.broadcast %27 : vector<4x8x1xf32> to vector<4x8x8xf32>
    %29 = arith.mulf %24, %28 : vector<4x8x8xf32>
    %30 = arith.truncf %29 : vector<4x8x8xf32> to vector<4x8x8xbf16>
    "tpu.trace_start"() <{level = 10 : i32, message = "hqk,khc->qhc"}> : () -> ()
    %cst_10 = arith.constant dense<0.000000e+00> : vector<4x8x8xf32>
    %31 = tpu.matmul %18, %30, %cst_10 {dimension_numbers = #tpu.dot_dimension_numbers<[0], [2], [2], [1], [0, 1, 0, 2, 1, 1], [1], [0]>} : vector<8x4x8xbf16>, vector<4x8x8xbf16>, vector<4x8x8xf32> -> vector<4x8x8xf32>
    %32 = tpu.transpose %31, [2, 0, 1] : vector<4x8x8xf32> -> vector<8x4x8xf32>
    "tpu.trace_stop"() : () -> ()
    %33 = vector.shape_cast %32 : vector<8x4x8xf32> to vector<8x32xf32>
    %34 = arith.truncf %33 : vector<8x32xf32> to vector<8x32xbf16>
    %c0_11 = arith.constant 0 : index
    %c0_12 = arith.constant 0 : index
    %35 = vector.load %arg5[%c0_11, %c0_12] : memref<32x32xbf16, #tpu.memory_space<vmem>>, vector<32x32xbf16>
    %cst_13 = arith.constant dense<0.000000e+00> : vector<8x32xf32>
    %36 = tpu.matmul %34, %35, %cst_13 {dimension_numbers = #tpu.dot_dimension_numbers<[1], [0], [0], [1], [0, 0, 1, 1], [], []>} : vector<8x32xbf16>, vector<32x32xbf16>, vector<8x32xf32> -> vector<8x32xf32>
    %c0_14 = arith.constant 0 : index
    %c0_15 = arith.constant 0 : index
    %37 = vector.load %arg6[%c0_14, %c0_15] : memref<1x32xf32, #tpu.memory_space<vmem>>, vector<1x32xf32>
    %38 = vector.broadcast %37 : vector<1x32xf32> to vector<8x32xf32>
    %39 = arith.addf %36, %38 : vector<8x32xf32>
    %c0_16 = arith.constant 0 : index
    %c0_17 = arith.constant 0 : index
    %c0_18 = arith.constant 0 : index
    %40 = vector.load %arg7[%c0_16, %c0_17, %c0_18] : memref<1x8x32xf32, #tpu.memory_space<vmem>>, vector<1x8x32xf32>
    %41 = vector.shape_cast %40 : vector<1x8x32xf32> to vector<8x32xf32>
    %42 = vector.shape_cast %39 : vector<8x32xf32> to vector<1x8x32xf32>
    tpu.vector_store %arg7[%c0_16, %c0_17, %c0_18], %42 {strides = array<i32>} : memref<1x8x32xf32, #tpu.memory_space<vmem>>, vector<1x8x32xf32>,
    return
  }
  func.func @transform_0(%arg0: i32, %arg1: i32) -> (i32, i32, i32) {
    %c0_i32 = arith.constant 0 : i32
    %c0_i32_0 = arith.constant 0 : i32
    %c0_i32_1 = arith.constant 0 : i32
    return %arg0, %c0_i32, %c0_i32_0 : i32, i32, i32
  }
  func.func @transform_1(%arg0: i32, %arg1: i32) -> (i32, i32) {
    %c0_i32 = arith.constant 0 : i32
    %c0_i32_0 = arith.constant 0 : i32
    %c0_i32_1 = arith.constant 0 : i32
    return %c0_i32, %c0_i32_0 : i32, i32
  }
  func.func @transform_2(%arg0: i32, %arg1: i32) -> (i32, i32) {
    %c0_i32 = arith.constant 0 : i32
    %c0_i32_0 = arith.constant 0 : i32
    %c0_i32_1 = arith.constant 0 : i32
    return %c0_i32, %c0_i32_0 : i32, i32
  }
  func.func @transform_3(%arg0: i32, %arg1: i32) -> (i32, i32) {
    %c0_i32 = arith.constant 0 : i32
    %c0_i32_0 = arith.constant 0 : i32
    %c0_i32_1 = arith.constant 0 : i32
    return %c0_i32, %c0_i32_0 : i32, i32
  }
  func.func @transform_4(%arg0: i32, %arg1: i32) -> (i32, i32) {
    %c0_i32 = arith.constant 0 : i32
    %c0_i32_0 = arith.constant 0 : i32
    %c0_i32_1 = arith.constant 0 : i32
    return %c0_i32, %c0_i32_0 : i32, i32
  }
  func.func @transform_5(%arg0: i32, %arg1: i32) -> (i32, i32, i32) {
    %c0_i32 = arith.constant 0 : i32
    %c0_i32_0 = arith.constant 0 : i32
    return %arg0, %arg1, %c0_i32 : i32, i32, i32
  }
}

</mosaic_0001>

<llo_original>
// kernel: tpu_custom_call.1
$region0: #{tpu_custom_call.1}
  #allocation0 [shape = 'u32[]', space=smem, size = 0x4, offset = 0x4, fixed_abs, tag = 'smem constant byte address 0x4 - core index']
  #allocation1 [shape = 'u32[144,128]{1,0:T(1,128)}', space=vmem, size = 0x12000, scoped, tag = 'internal scratch']
  %s0 = inlined_call_operand.hbm [shape: f32[2,8,32], index: 0, kind: input, shape index: {}]
  %s1 = inlined_call_operand.hbm [shape: bf16[32,96], index: 1, kind: input, shape index: {}]
  %s2 = inlined_call_operand.vmem [shape: f32[1,96], index: 2, kind: input, shape index: {}]
  %s3 = inlined_call_operand.hbm [shape: bf16[32,32], index: 3, kind: input, shape index: {}]
  %s4 = inlined_call_operand.vmem [shape: f32[1,32], index: 4, kind: input, shape index: {}]
  %s5 = inlined_call_operand.hbm [shape: f32[2,8,32], index: 5, kind: output, shape index: {}]
  %s6 = sld [smem:[#allocation0]]
  $region65: #{tpu_custom_call.1} parent=0
    _
  %s8 = ssub.s32 1, %s6
  %s9 = scalar_select 0, %s8, %s6
  $region1: #{tpu_custom_call.1} parent=0
    #allocation2 [shape = 'u8[8192]{0}', space=vmem, size = 0x2000, scoped, tag = 'input window, operand 0']
    #allocation3 [shape = 's32[2]{0}', space=sflag, size = 0x8, scoped, tag = 'scoped memory for tpu_custom_call.1']
    #allocation4 [shape = 's32[2]{0}', space=sflag, size = 0x8, scoped, tag = 'scoped memory for tpu_custom_call.1']
    #allocation5 [shape = 'u8[8192]{0}', space=vmem, size = 0x2000, scoped, tag = 'input window, operand 1, single buffered']
    #allocation6 [shape = 's32[1]{0}', space=sflag, size = 0x4, scoped, tag = 'scoped memory for tpu_custom_call.1']
    #allocation7 [shape = 'u8[8192]{0}', space=vmem, size = 0x2000, scoped, tag = 'input window, operand 3, single buffered']
    #allocation8 [shape = 'u8[8192]{0}', space=vmem, size = 0x2000, scoped, tag = 'output window, operand 0']
    %10 = vsyncpa [#allocation3], 0
    %s11 = scalar_lea.sflag [#allocation3], 1
    %12 = vsyncpa %s11, 0
    %13 = vsyncpa [#allocation6], 0
    %14 = vsyncpa [#allocation4], 0
    %s15 = scalar_lea.sflag [#allocation4], 1
    %16 = vsyncpa %s15, 0
    loop: start=0, step=1, limit=4
    $region2: #{tpu_custom_call.1} parent=1 // loop_pre_header
      _
    $region3: #{tpu_custom_call.1} parent=1 // loop_header
      %s18 = sphi 0, %s22
      %p19 = scmp.ge.s32.totalorder %s18, 4
      %s25 = sphi 0, %s37
      %s26 = sphi 0, %s33
      %s27 = sphi 0, %s25
      %s28 = sphi 0, %s26
      %s29 = sphi 0, %s27
      %s30 = sphi 0, %s28
      %s40 = sphi 0, %s42
      %s43 = sphi 0, %s40
      %s44 = sphi 0, %s43
      %s60 = sphi 0, %s44
      %s64 = sphi 0, %s64
      %s66 = sphi 0, %s64
      %s67 = sphi 0, %s66
      %s81 = sphi 0, %s67
      %s85 = sphi 0, %s85
      %s87 = sphi 0, %s85
      %s88 = sphi 0, %s87
      %s102 = sphi 0, %s88
      %s106 = sphi 0, %s106
      %s108 = sphi 0, %s106
      %s109 = sphi 0, %s108
      %s123 = sphi 0, %s109
      %s127 = sphi 0, %s127
      %s129 = sphi 0, %s127
      %s130 = sphi 0, %s129
      %s144 = sphi 0, %s130
      %s152 = sphi 0, %s154
      %s155 = sphi 0, %s152
      %s156 = sphi 0, %s155
      %s172 = sphi 0, %s156
    $region4: #{tpu_custom_call.1} parent=1 // loop_header_branch
      %21 = sbr.rel (%p19) target = $region8
    $region5: #{tpu_custom_call.1} parent=1 // loop_body
      %s23 = ssub.s32 %s18, 1
      %s24 = ssub.s32 %s18, 2
      %s31 = sadd.s32 1, %s26
      %p32 = scmp.ge.s32.totalorder %s31, 1
      %s33 = scalar_select %p32, 0, %s31
      %s34 = sadd.s32 1, %s25
      %s35 = scalar_select %p32, %s34, %s25
      %p36 = scmp.ge.s32.totalorder %s35, 2
      %s37 = scalar_select %p36, 0, %s35
      %s38 = ssub.s32 %s25, %s37
      %p39 = scmp.eq.s32.totalorder %s38, 0
      %s41 = sadd.s32 %s40, 1
      %s42 = scalar_select %p39, %s40, %s41
      %p45 = pneg %p39
      %p46 = scmp.eq.s32.totalorder %s18, 1
      %p47 = por %p45, %p46
      %p48 = scmp.ne.s32.totalorder %s40, %s43
      %p49 = scmp.eq.s32.totalorder %s18, 0
      %p50 = por %p48, %p49
      %p51 = scmp.ne.s32.totalorder %s40, %s43
      %p52 = scmp.eq.s32.totalorder %s23, 1
      %p53 = por %p51, %p52
      %p54 = scmp.ne.s32.totalorder %s43, %s44
      %p55 = scmp.eq.s32.totalorder %s23, 0
      %p56 = por %p54, %p55
      %p57 = scmp.ne.s32.totalorder %s43, %s44
      %p58 = scmp.eq.s32.totalorder %s24, 1
      %p59 = por %p57, %p58
      %p61 = scmp.ne.s32.totalorder %s44, %s60
      %p62 = scmp.eq.s32.totalorder %s24, 0
      %p63 = por %p61, %p62
      %s65 = sadd.s32 %s64, 1
      %p68 = scmp.eq.s32.totalorder %s18, 1
      %p69 = scmp.ne.s32.totalorder %s64, %s66
      %p70 = scmp.eq.s32.totalorder %s18, 0
      %p71 = por %p69, %p70
      %p72 = scmp.ne.s32.totalorder %s64, %s66
      %p73 = scmp.eq.s32.totalorder %s23, 1
      %p74 = por %p72, %p73
      %p75 = scmp.ne.s32.totalorder %s66, %s67
      %p76 = scmp.eq.s32.totalorder %s23, 0
      %p77 = por %p75, %p76
      %p78 = scmp.ne.s32.totalorder %s66, %s67
      %p79 = scmp.eq.s32.totalorder %s24, 1
      %p80 = por %p78, %p79
      %p82 = scmp.ne.s32.totalorder %s67, %s81
      %p83 = scmp.eq.s32.totalorder %s24, 0
      %p84 = por %p82, %p83
      %s86 = sadd.s32 %s85, 1
      %p89 = scmp.eq.s32.totalorder %s18, 1
      %p90 = scmp.ne.s32.totalorder %s85, %s87
      %p91 = scmp.eq.s32.totalorder %s18, 0
      %p92 = por %p90, %p91
      %p93 = scmp.ne.s32.totalorder %s85, %s87
      %p94 = scmp.eq.s32.totalorder %s23, 1
      %p95 = por %p93, %p94
      %p96 = scmp.ne.s32.totalorder %s87, %s88
      %p97 = scmp.eq.s32.totalorder %s23, 0
      %p98 = por %p96, %p97
      %p99 = scmp.ne.s32.totalorder %s87, %s88
      %p100 = scmp.eq.s32.totalorder %s24, 1
      %p101 = por %p99, %p100
      %p103 = scmp.ne.s32.totalorder %s88, %s102
      %p104 = scmp.eq.s32.totalorder %s24, 0
      %p105 = por %p103, %p104
      %s107 = sadd.s32 %s106, 1
      %p110 = scmp.eq.s32.totalorder %s18, 1
      %p111 = scmp.ne.s32.totalorder %s106, %s108
      %p112 = scmp.eq.s32.totalorder %s18, 0
      %p113 = por %p111, %p112
      %p114 = scmp.ne.s32.totalorder %s106, %s108
      %p115 = scmp.eq.s32.totalorder %s23, 1
      %p116 = por %p114, %p115
      %p117 = scmp.ne.s32.totalorder %s108, %s109
      %p118 = scmp.eq.s32.totalorder %s23, 0
      %p119 = por %p117, %p118
      %p120 = scmp.ne.s32.totalorder %s108, %s109
      %p121 = scmp.eq.s32.totalorder %s24, 1
      %p122 = por %p120, %p121
      %p124 = scmp.ne.s32.totalorder %s109, %s123
      %p125 = scmp.eq.s32.totalorder %s24, 0
      %p126 = por %p124, %p125
      %s128 = sadd.s32 %s127, 1
      %p131 = scmp.eq.s32.totalorder %s18, 1
      %p132 = scmp.ne.s32.totalorder %s127, %s129
      %p133 = scmp.eq.s32.totalorder %s18, 0
      %p134 = por %p132, %p133
      %p135 = scmp.ne.s32.totalorder %s127, %s129
      %p136 = scmp.eq.s32.totalorder %s23, 1
      %p137 = por %p135, %p136
      %p138 = scmp.ne.s32.totalorder %s129, %s130
      %p139 = scmp.eq.s32.totalorder %s23, 0
      %p140 = por %p138, %p139
      %p141 = scmp.ne.s32.totalorder %s129, %s130
      %p142 = scmp.eq.s32.totalorder %s24, 1
      %p143 = por %p141, %p142
      %p145 = scmp.ne.s32.totalorder %s130, %s144
      %p146 = scmp.eq.s32.totalorder %s24, 0
      %p147 = por %p145, %p146
      %s148 = ssub.s32 %s25, %s37
      %s149 = ssub.s32 %s26, %s33
      %s150 = sor.u32 %s148, %s149
      %p151 = scmp.eq.s32.totalorder %s150, 0
      %s153 = sadd.s32 %s152, 1
      %s154 = scalar_select %p151, %s152, %s153
      %p157 = pneg %p151
      %p158 = scmp.eq.s32.totalorder %s18, 1
      %p159 = por %p157, %p158
      %p160 = scmp.ne.s32.totalorder %s152, %s155
      %p161 = scmp.eq.s32.totalorder %s18, 0
      %p162 = por %p160, %p161
      %p163 = scmp.ne.s32.totalorder %s152, %s155
      %p164 = scmp.eq.s32.totalorder %s23, 1
      %p165 = por %p163, %p164
      %p166 = scmp.ne.s32.totalorder %s155, %s156
      %p167 = scmp.eq.s32.totalorder %s23, 0
      %p168 = por %p166, %p167
      %p169 = scmp.ne.s32.totalorder %s155, %s156
      %p170 = scmp.eq.s32.totalorder %s24, 1
      %p171 = por %p169, %p170
      %p173 = scmp.ne.s32.totalorder %s156, %s172
      %p174 = scmp.eq.s32.totalorder %s24, 0
      %p175 = por %p173, %p174
      %p176 = scmp.le.s32.totalorder 1, %s18
      %p177 = scmp.lt.s32.totalorder %s18, 3
      %p178 = pnand %p176, %p177
      %p179 = pneg %p178
      // Predicated region
      $region9: #{tpu_custom_call.1} parent=5 // pred_check
        _
      $region10: #{tpu_custom_call.1} parent=5 // pred_check_branch
        %181 = sbr.rel (%p178) target = $region12
      $region11: #{tpu_custom_call.1} parent=5 // pred_region
        %s182 = ssub.s32 %s18, 1
        // Predicated region
        $region13: #{tpu_custom_call.1} parent=11 // pred_check
          %p183 = pneg %p77
        $region14: #{tpu_custom_call.1} parent=11 // pred_check_branch
          %185 = sbr.rel (%p183) target = $region16
        $region15: #{tpu_custom_call.1} parent=11 // pred_region
          %s187 = ssub.s32 256, 256
          %188 = vsyncadd [#allocation6], %s187
          %s189 = sshll.u32 [#allocation5], 4
          %s190 = int_to_ptr.vmem [resolvable:$true] %s189
          %195 = dma.hbm_to_vmem [thread:$0]  %s1, 256, %s190, [#allocation6], 64, 64, 4
        $region16: #{tpu_custom_call.1} parent=11 // pred_fallthru
          _
        // Predicated region
        $region17: #{tpu_custom_call.1} parent=11 // pred_check
          %p196 = pneg %p98
        $region18: #{tpu_custom_call.1} parent=11 // pred_check_branch
          %198 = sbr.rel (%p196) target = $region20
        $region19: #{tpu_custom_call.1} parent=11 // pred_region
          _
        $region20: #{tpu_custom_call.1} parent=11 // pred_fallthru
          _
        // Predicated region
        $region21: #{tpu_custom_call.1} parent=11 // pred_check
          %p199 = pneg %p119
        $region22: #{tpu_custom_call.1} parent=11 // pred_check_branch
          %201 = sbr.rel (%p199) target = $region24
        $region23: #{tpu_custom_call.1} parent=11 // pred_region
          %s203 = ssub.s32 256, 256
          %204 = vsyncadd [#allocation6], %s203
          %s205 = sshll.u32 [#allocation7], 4
          %s206 = int_to_ptr.vmem [resolvable:$true] %s205
          %211 = dma.hbm_to_vmem [thread:$0]  %s3, 256, %s206, [#allocation6], 64, 64, 4
        $region24: #{tpu_custom_call.1} parent=11 // pred_fallthru
          _
        // Predicated region
        $region25: #{tpu_custom_call.1} parent=11 // pred_check
          %p212 = pneg %p140
        $region26: #{tpu_custom_call.1} parent=11 // pred_check_branch
          %214 = sbr.rel (%p212) target = $region28
        $region27: #{tpu_custom_call.1} parent=11 // pred_region
          _
        $region28: #{tpu_custom_call.1} parent=11 // pred_fallthru
          _
      $region12: #{tpu_custom_call.1} parent=5 // pred_fallthru
        _
      %p215 = scmp.lt.s32.totalorder %s18, 2
      // Predicated region
      $region29: #{tpu_custom_call.1} parent=5 // pred_check
        %p216 = pneg %p215
      $region30: #{tpu_custom_call.1} parent=5 // pred_check_branch
        %218 = sbr.rel (%p216) target = $region32
      $region31: #{tpu_custom_call.1} parent=5 // pred_region
        // Predicated region
        $region33: #{tpu_custom_call.1} parent=31 // pred_check
          %p219 = pneg %p50
        $region34: #{tpu_custom_call.1} parent=31 // pred_check_branch
          %221 = sbr.rel (%p219) target = $region36
        $region35: #{tpu_custom_call.1} parent=31 // pred_region
          %s222 = sand.u32 %s40, 1
          %s223 = scalar_lea.sflag [#allocation3], %s222
          %s224 = sand.u32 %s40, 1
          %s225 = smul.addr %s224, 8
          %s226 = scalar_lea.vmem [#allocation2], %s225
          %s228 = ssub.s32 128, 128
          %229 = vsyncadd %s223, %s228
          %s230 = smul.addr %s25, 128
          %s231 = scalar_lea.hbm %s0, %s230
          %s233 = sshll.u32 %s226, 4
          %s234 = int_to_ptr.vmem [resolvable:$true] %s233
          %236 = dma.hbm_to_vmem [thread:$0]  %s231, 128, %s234, %s223
        $region36: #{tpu_custom_call.1} parent=31 // pred_fallthru
          _
      $region32: #{tpu_custom_call.1} parent=5 // pred_fallthru
        _
      %p237 = scmp.le.s32.totalorder 1, %s18
      %p238 = scmp.lt.s32.totalorder %s18, 3
      %p239 = pnand %p237, %p238
      %p240 = pneg %p239
      // Predicated region
      $region37: #{tpu_custom_call.1} parent=5 // pred_check
        _
      $region38: #{tpu_custom_call.1} parent=5 // pred_check_branch
        %242 = sbr.rel (%p239) target = $region40
      $region39: #{tpu_custom_call.1} parent=5 // pred_region
        %s243 = ssub.s32 %s18, 1
        %s244 = sand.u32 %s43, 1
        %s245 = scalar_lea.sflag [#allocation3], %s244
        %s246 = sand.u32 %s43, 1
        %s247 = smul.addr %s246, 8
        %s248 = scalar_lea.vmem [#allocation2], %s247
        // Predicated region
        $region41: #{tpu_custom_call.1} parent=39 // pred_check
          %p249 = pneg %p56
        $region42: #{tpu_custom_call.1} parent=39 // pred_check_branch
          %251 = sbr.rel (%p249) target = $region44
        $region43: #{tpu_custom_call.1} parent=39 // pred_region
          %252 = dma.done %s245, 128
        $region44: #{tpu_custom_call.1} parent=39 // pred_fallthru
          _
        // Predicated region
        $region45: #{tpu_custom_call.1} parent=39 // pred_check
          %p253 = pneg %p77
        $region46: #{tpu_custom_call.1} parent=39 // pred_check_branch
          %255 = sbr.rel (%p253) target = $region48
        $region47: #{tpu_custom_call.1} parent=39 // pred_region
          %256 = dma.done [#allocation6], 256
        $region48: #{tpu_custom_call.1} parent=39 // pred_fallthru
          _
        // Predicated region
        $region49: #{tpu_custom_call.1} parent=39 // pred_check
          %p257 = pneg %p119
        $region50: #{tpu_custom_call.1} parent=39 // pred_check_branch
          %259 = sbr.rel (%p257) target = $region52
        $region51: #{tpu_custom_call.1} parent=39 // pred_region
          %260 = dma.done [#allocation6], 256
        $region52: #{tpu_custom_call.1} parent=39 // pred_fallthru
          _
        %s261 = sand.u32 %s43, 1
        %s262 = scalar_lea.sflag [#allocation3], %s261
        %s263 = sand.u32 %s43, 1
        %s264 = smul.addr %s263, 8
        %s265 = scalar_lea.vmem [#allocation2], %s264
        %p266 = pneg %p56
        %p267 = pneg %p53
        %p268 = pneg %p77
        %p269 = pneg %p74
        %p270 = pneg %p98
        %p271 = pneg %p95
        %p272 = pneg %p119
        %p273 = pneg %p116
        %p274 = pneg %p140
        %p275 = pneg %p137
        %p276 = pneg %p168
        %p277 = pneg %p165
        %s278 = sand.u32 %s155, 1
        %s279 = scalar_lea.sflag [#allocation4], %s278
        %s280 = sand.u32 %s155, 1
        %s281 = smul.addr %s280, 8
        %s282 = scalar_lea.vmem [#allocation8], %s281
        %v284 = vld [vmem:[%s248] sm:$0xff]
        %v285 = vpack.c.bf16 %v284, %v284
        %v286 = vld [vmem:[#allocation5] sm:$0xf]
        %v287 = vld [vmem:[#allocation5 + $0x4] sm:$0xf]
        %v288 = vld [vmem:[#allocation5 + $0x8] sm:$0xf]
        %v289 = vld [vmem:[#allocation5 + $0xc] sm:$0xf]
        %v290 = vld [vmem:[%s2] sm:$0x1]
        %v292 = vlaneseq
        %v293 = vshrl.u32 %v292, 7
        %v294 = vsub.s32 0, %v293
        %v295 = vrot.slane %v290, %v294
        %v301 = vunpack.c.l.b16 %v286
        %v302 = vunpack.c.l.b16 %v287
        %v303 = vunpack.c.l.b16 %v288
        %v304 = vunpack.c.l.b16 %v289
        %v305 = vpack.c.b16 %v302, %v301
        %v306 = vpack.c.b16 %v304, %v303
        %vm309 = vcmask 261120
        %v311 = vsel %vm309, %v285, 0
        %313 = vmatprep.subr.bf16.mxu0 0
        %314 = vmatpush1.bf16.msra.mxu0 %v305
        %315 = vmatprep.subr.bf16.mxu0 0
        %316 = vmatpush1.bf16.msra.mxu0 %v306
        %317 = vmatprep.subr.bf16.mxu0 0
        %318 = vmatpush1.bf16.msra.mxu0 0
        %319 = vmatprep.subr.bf16.mxu0 0
        %320 = vmatpush1.bf16.msra.mxu0 0
        %321 = vmatprep.subr.bf16.mxu0 0
        %322 = vmatpush1.bf16.msra.mxu0 0
        %323 = vmatprep.subr.bf16.mxu0 0
        %324 = vmatpush1.bf16.msra.mxu0 0
        %325 = vmatprep.subr.bf16.mxu0 0
        %326 = vmatpush1.bf16.msra.mxu0 0
        %327 = vmatprep.subr.bf16.mxu0 0
        %328 = vmatpush1.bf16.msra.mxu0 0
        %329 = vmatprep.subr.bf16.mxu0 0
        %330 = vmatpush1.bf16.msra.mxu0 0
        %331 = vmatprep.subr.bf16.mxu0 0
        %332 = vmatpush1.bf16.msra.mxu0 0
        %333 = vmatprep.subr.bf16.mxu0 0
        %334 = vmatpush1.bf16.msra.mxu0 0
        %335 = vmatprep.subr.bf16.mxu0 0
        %336 = vmatpush1.bf16.msra.mxu0 0
        %337 = vmatprep.subr.bf16.mxu0 0
        %338 = vmatpush1.bf16.msra.mxu0 0
        %339 = vmatprep.subr.bf16.mxu0 0
        %340 = vmatpush1.bf16.msra.mxu0 0
        %341 = vmatprep.subr.bf16.mxu0 0
        %342 = vmatpush1.bf16.msra.mxu0 0
        %343 = vmatprep.subr.bf16.mxu0 0
        %344 = vmatpush1.bf16.msra.mxu0 0
        %345 = vmatprep.mubr.bf16.mxu0 0
        %346 = vmatmul.mubr.bf16.gmra.mrb[0].mxu0 %v311
        %v347 = vpop.f32.mrb[0].mxu0
        %v348 = vadd.f32 %v295, %v347
        %v349 = vpop.f32.mrb[0].mxu0
        %v350 = vpop.f32.mrb[0].mxu0
        %v351 = vpop.f32.mrb[0].mxu0
        %352 = vdwg.mxu0
        %v353 = vmul.f32 %v348, 0.35355338
        %355 = vrot.lane.b32.xlu0 %v353, 120
        %v356 = vpop.permute.xlu0 %355
        %358 = vrot.lane.b32.xlu0 %v353, 112
        %v359 = vpop.permute.xlu0 %358
        %361 = vrot.lane.b32.xlu0 %v353, 104
        %v362 = vpop.permute.xlu0 %361
        %v364 = vcombine.low %v353, %v359
        %v365 = vcombine.high %v353, %v359
        %v367 = vunpack.c.l.s4 1983009808
        %v368 = vunpack.c.0.s8 %v367
        %v369 = vlaneseq
        %v370 = vshrl.u32 %v369, 7
        %v371 = vsub.s32 %v368, %v370
        %v372 = vrot.slane %v364, %v371
        %v374 = vunpack.c.l.s4 1983009808
        %v375 = vunpack.c.0.s8 %v374
        %v376 = vlaneseq
        %v377 = vshrl.u32 %v376, 7
        %v378 = vsub.s32 %v375, %v377
        %v379 = vrot.slane %v365, %v378
        %v380 = vcombine.low %v356, %v362
        %v381 = vcombine.high %v356, %v362
        %v383 = vunpack.c.l.s4 1983009808
        %v384 = vunpack.c.0.s8 %v383
        %v385 = vlaneseq
        %v386 = vshrl.u32 %v385, 7
        %v387 = vsub.s32 %v384, %v386
        %v388 = vrot.slane %v380, %v387
        %v390 = vunpack.c.l.s4 1983009808
        %v391 = vunpack.c.0.s8 %v390
        %v392 = vlaneseq
        %v393 = vshrl.u32 %v392, 7
        %v394 = vsub.s32 %v391, %v393
        %v395 = vrot.slane %v381, %v394
        %v396 = vcombine.low %v372, %v388
        %v397 = vcombine.high %v372, %v388
        %v399 = vunpack.c.l.s4 1934713408
        %v400 = vunpack.c.0.s8 %v399
        %v401 = vlaneseq
        %v402 = vshrl.u32 %v401, 7
        %v403 = vsub.s32 %v400, %v402
        %v404 = vrot.slane %v396, %v403
        %v406 = vunpack.c.l.s4 1934713408
        %v407 = vunpack.c.0.s8 %v406
        %v408 = vlaneseq
        %v409 = vshrl.u32 %v408, 7
        %v410 = vsub.s32 %v407, %v409
        %v411 = vrot.slane %v397, %v410
        %v412 = vcombine.low %v379, %v395
        %v413 = vcombine.high %v379, %v395
        %v415 = vunpack.c.l.s4 1934713408
        %v416 = vunpack.c.0.s8 %v415
        %v417 = vlaneseq
        %v418 = vshrl.u32 %v417, 7
        %v419 = vsub.s32 %v416, %v418
        %v420 = vrot.slane %v412, %v419
        %v422 = vunpack.c.l.s4 1934713408
        %v423 = vunpack.c.0.s8 %v422
        %v424 = vlaneseq
        %v425 = vshrl.u32 %v424, 7
        %v426 = vsub.s32 %v423, %v425
        %v427 = vrot.slane %v413, %v426
        %v428 = vcombine.high %v404, 0.0
        %v429 = vcombine.high %v411, 0.0
        %v430 = vcombine.high %v420, 0.0
        %v431 = vcombine.high %v427, 0.0
        %v432 = vpack.c.bf16 %v404, %v404
        %v433 = vpack.c.bf16 %v428, %v428
        %v434 = vpack.c.bf16 %v411, %v411
        %v435 = vpack.c.bf16 %v429, %v429
        %v436 = vpack.c.bf16 %v420, %v420
        %v437 = vpack.c.bf16 %v430, %v430
        %v438 = vpack.c.bf16 %v427, %v427
        %v439 = vpack.c.bf16 %v431, %v431
        %441 = vrot.lane.b32.xlu0 %v348, 120
        %v442 = vpop.permute.xlu0 %441
        %443 = vrot.lane.b32.xlu0 %v348, 112
        %v444 = vpop.permute.xlu0 %443
        %445 = vrot.lane.b32.xlu0 %v348, 104
        %v446 = vpop.permute.xlu0 %445
        %447 = vrot.lane.b32.xlu0 %v348, 96
        %v448 = vpop.permute.xlu0 %447
        %449 = vrot.lane.b32.xlu0 %v442, 96
        %v450 = vpop.permute.xlu0 %449
        %451 = vrot.lane.b32.xlu0 %v444, 96
        %v452 = vpop.permute.xlu0 %451
        %453 = vrot.lane.b32.xlu0 %v446, 96
        %v454 = vpop.permute.xlu0 %453
        %v459 = vcombine.low %v448, %v452
        %v460 = vcombine.high %v448, %v452
        %v462 = vunpack.c.l.s4 1983009808
        %v463 = vunpack.c.0.s8 %v462
        %v464 = vlaneseq
        %v465 = vshrl.u32 %v464, 7
        %v466 = vsub.s32 %v463, %v465
        %v467 = vrot.slane %v459, %v466
        %v469 = vunpack.c.l.s4 1983009808
        %v470 = vunpack.c.0.s8 %v469
        %v471 = vlaneseq
        %v472 = vshrl.u32 %v471, 7
        %v473 = vsub.s32 %v470, %v472
        %v474 = vrot.slane %v460, %v473
        %v475 = vcombine.low %v450, %v454
        %v476 = vcombine.high %v450, %v454
        %v478 = vunpack.c.l.s4 1983009808
        %v479 = vunpack.c.0.s8 %v478
        %v480 = vlaneseq
        %v481 = vshrl.u32 %v480, 7
        %v482 = vsub.s32 %v479, %v481
        %v483 = vrot.slane %v475, %v482
        %v485 = vunpack.c.l.s4 1983009808
        %v486 = vunpack.c.0.s8 %v485
        %v487 = vlaneseq
        %v488 = vshrl.u32 %v487, 7
        %v489 = vsub.s32 %v486, %v488
        %v490 = vrot.slane %v476, %v489
        %v491 = vcombine.low %v467, %v483
        %v492 = vcombine.high %v467, %v483
        %v494 = vunpack.c.l.s4 1934713408
        %v495 = vunpack.c.0.s8 %v494
        %v496 = vlaneseq
        %v497 = vshrl.u32 %v496, 7
        %v498 = vsub.s32 %v495, %v497
        %v499 = vrot.slane %v491, %v498
        %v501 = vunpack.c.l.s4 1934713408
        %v502 = vunpack.c.0.s8 %v501
        %v503 = vlaneseq
        %v504 = vshrl.u32 %v503, 7
        %v505 = vsub.s32 %v502, %v504
        %v506 = vrot.slane %v492, %v505
        %v507 = vcombine.low %v474, %v490
        %v508 = vcombine.high %v474, %v490
        %v510 = vunpack.c.l.s4 1934713408
        %v511 = vunpack.c.0.s8 %v510
        %v512 = vlaneseq
        %v513 = vshrl.u32 %v512, 7
        %v514 = vsub.s32 %v511, %v513
        %v515 = vrot.slane %v507, %v514
        %v517 = vunpack.c.l.s4 1934713408
        %v518 = vunpack.c.0.s8 %v517
        %v519 = vlaneseq
        %v520 = vshrl.u32 %v519, 7
        %v521 = vsub.s32 %v518, %v520
        %v522 = vrot.slane %v508, %v521
        %v523 = vcombine.high %v499, 0.0
        %v524 = vcombine.high %v506, 0.0
        %v525 = vcombine.high %v515, 0.0
        %v526 = vcombine.high %v522, 0.0
        %v527 = vpack.c.bf16 %v499, %v499
        %v528 = vpack.c.bf16 %v523, %v523
        %v529 = vpack.c.bf16 %v506, %v506
        %v530 = vpack.c.bf16 %v524, %v524
        %v531 = vpack.c.bf16 %v515, %v515
        %v532 = vpack.c.bf16 %v525, %v525
        %v533 = vpack.c.bf16 %v522, %v522
        %v534 = vpack.c.bf16 %v526, %v526
        %535 = vrot.lane.b32.xlu0 %v348, 64
        %v536 = vpop.permute.xlu0 %535
        %537 = vrot.lane.b32.xlu0 %v442, 64
        %v538 = vpop.permute.xlu0 %537
        %539 = vrot.lane.b32.xlu0 %v444, 64
        %v540 = vpop.permute.xlu0 %539
        %541 = vrot.lane.b32.xlu0 %v446, 64
        %v542 = vpop.permute.xlu0 %541
        %v547 = vcombine.low %v536, %v540
        %v548 = vcombine.high %v536, %v540
        %v550 = vunpack.c.l.s4 1983009808
        %v551 = vunpack.c.0.s8 %v550
        %v552 = vlaneseq
        %v553 = vshrl.u32 %v552, 7
        %v554 = vsub.s32 %v551, %v553
        %v555 = vrot.slane %v547, %v554
        %v557 = vunpack.c.l.s4 1983009808
        %v558 = vunpack.c.0.s8 %v557
        %v559 = vlaneseq
        %v560 = vshrl.u32 %v559, 7
        %v561 = vsub.s32 %v558, %v560
        %v562 = vrot.slane %v548, %v561
        %v563 = vcombine.low %v538, %v542
        %v564 = vcombine.high %v538, %v542
        %v566 = vunpack.c.l.s4 1983009808
        %v567 = vunpack.c.0.s8 %v566
        %v568 = vlaneseq
        %v569 = vshrl.u32 %v568, 7
        %v570 = vsub.s32 %v567, %v569
        %v571 = vrot.slane %v563, %v570
        %v573 = vunpack.c.l.s4 1983009808
        %v574 = vunpack.c.0.s8 %v573
        %v575 = vlaneseq
        %v576 = vshrl.u32 %v575, 7
        %v577 = vsub.s32 %v574, %v576
        %v578 = vrot.slane %v564, %v577
        %v579 = vcombine.low %v555, %v571
        %v580 = vcombine.high %v555, %v571
        %v582 = vunpack.c.l.s4 1934713408
        %v583 = vunpack.c.0.s8 %v582
        %v584 = vlaneseq
        %v585 = vshrl.u32 %v584, 7
        %v586 = vsub.s32 %v583, %v585
        %v587 = vrot.slane %v579, %v586
        %v589 = vunpack.c.l.s4 1934713408
        %v590 = vunpack.c.0.s8 %v589
        %v591 = vlaneseq
        %v592 = vshrl.u32 %v591, 7
        %v593 = vsub.s32 %v590, %v592
        %v594 = vrot.slane %v580, %v593
        %v595 = vcombine.low %v562, %v578
        %v596 = vcombine.high %v562, %v578
        %v598 = vunpack.c.l.s4 1934713408
        %v599 = vunpack.c.0.s8 %v598
        %v600 = vlaneseq
        %v601 = vshrl.u32 %v600, 7
        %v602 = vsub.s32 %v599, %v601
        %v603 = vrot.slane %v595, %v602
        %v605 = vunpack.c.l.s4 1934713408
        %v606 = vunpack.c.0.s8 %v605
        %v607 = vlaneseq
        %v608 = vshrl.u32 %v607, 7
        %v609 = vsub.s32 %v606, %v608
        %v610 = vrot.slane %v596, %v609
        %v611 = vcombine.high %v587, 0.0
        %v612 = vcombine.high %v594, 0.0
        %v613 = vcombine.high %v603, 0.0
        %v614 = vcombine.high %v610, 0.0
        %v615 = vpack.c.bf16 %v587, %v587
        %v616 = vpack.c.bf16 %v611, %v611
        %v617 = vpack.c.bf16 %v594, %v594
        %v618 = vpack.c.bf16 %v612, %v612
        %v619 = vpack.c.bf16 %v603, %v603
        %v620 = vpack.c.bf16 %v613, %v613
        %v621 = vpack.c.bf16 %v610, %v610
        %v622 = vpack.c.bf16 %v614, %v614
        %v623 = vcombine.low %v432, %v436
        %v625 = vunpack.c.l.s4 1983009808
        %v626 = vunpack.c.0.s8 %v625
        %v627 = vlaneseq
        %v628 = vshrl.u32 %v627, 7
        %v629 = vsub.s32 %v626, %v628
        %v630 = vrot.slane %v623, %v629
        %v631 = vcombine.low %v434, %v438
        %v633 = vunpack.c.l.s4 1983009808
        %v634 = vunpack.c.0.s8 %v633
        %v635 = vlaneseq
        %v636 = vshrl.u32 %v635, 7
        %v637 = vsub.s32 %v634, %v636
        %v638 = vrot.slane %v631, %v637
        %v639 = vcombine.low %v630, %v638
        %v641 = vunpack.c.l.s4 1934713408
        %v642 = vunpack.c.0.s8 %v641
        %v643 = vlaneseq
        %v644 = vshrl.u32 %v643, 7
        %v645 = vsub.s32 %v642, %v644
        %v646 = vrot.slane %v639, %v645
        %v647 = vcombine.high %v646, 0
        %v648 = vcombine.low %v433, %v437
        %v650 = vunpack.c.l.s4 1983009808
        %v651 = vunpack.c.0.s8 %v650
        %v652 = vlaneseq
        %v653 = vshrl.u32 %v652, 7
        %v654 = vsub.s32 %v651, %v653
        %v655 = vrot.slane %v648, %v654
        %v656 = vcombine.low %v435, %v439
        %v658 = vunpack.c.l.s4 1983009808
        %v659 = vunpack.c.0.s8 %v658
        %v660 = vlaneseq
        %v661 = vshrl.u32 %v660, 7
        %v662 = vsub.s32 %v659, %v661
        %v663 = vrot.slane %v656, %v662
        %v664 = vcombine.low %v655, %v663
        %v666 = vunpack.c.l.s4 1934713408
        %v667 = vunpack.c.0.s8 %v666
        %v668 = vlaneseq
        %v669 = vshrl.u32 %v668, 7
        %v670 = vsub.s32 %v667, %v669
        %v671 = vrot.slane %v664, %v670
        %v672 = vcombine.high %v671, 0
        %v675 = vpack.i.b16 %v671, %v646
        %v676 = vshrl.u32 %v646, 16
        %v677 = vshrl.u32 %v671, 16
        %v678 = vpack.i.b16 %v677, %v676
        %v681 = vpack.i.b16 %v672, %v647
        %v682 = vshrl.u32 %v647, 16
        %v683 = vshrl.u32 %v672, 16
        %v684 = vpack.i.b16 %v683, %v682
        %685 = vxpose.xlu0.c.b16.start [1/8] %v527, 128
        %686 = vxpose.xlu0.c.b16.cont [2/8] 0, 128
        %687 = vxpose.xlu0.c.b16.cont [3/8] 0, 128
        %688 = vxpose.xlu0.c.b16.cont [4/8] 0, 128
        %689 = vxpose.xlu0.c.b16.cont [5/8] 0, 128
        %690 = vxpose.xlu0.c.b16.cont [6/8] 0, 128
        %691 = vxpose.xlu0.c.b16.cont [7/8] 0, 128
        %692 = vxpose.xlu0.c.b16.end [8/8] 0, 128
        %v693 = vpop.trf.xlu0
        %v694 = vpop.trf.xlu0
        %v695 = vpop.trf.xlu0
        %v696 = vpop.trf.xlu0
        %v697 = vpop.trf.xlu0
        %v698 = vpop.trf.xlu0
        %v699 = vpop.trf.xlu0
        %v700 = vpop.trf.xlu0
        %701 = vxpose.xlu0.c.b16.start [1/8] %v528, 128
        %702 = vxpose.xlu0.c.b16.cont [2/8] 0, 128
        %703 = vxpose.xlu0.c.b16.cont [3/8] 0, 128
        %704 = vxpose.xlu0.c.b16.cont [4/8] 0, 128
        %705 = vxpose.xlu0.c.b16.cont [5/8] 0, 128
        %706 = vxpose.xlu0.c.b16.cont [6/8] 0, 128
        %707 = vxpose.xlu0.c.b16.cont [7/8] 0, 128
        %708 = vxpose.xlu0.c.b16.end [8/8] 0, 128
        %v709 = vpop.trf.xlu0
        %v710 = vpop.trf.xlu0
        %v711 = vpop.trf.xlu0
        %v712 = vpop.trf.xlu0
        %v713 = vpop.trf.xlu0
        %v714 = vpop.trf.xlu0
        %v715 = vpop.trf.xlu0
        %v716 = vpop.trf.xlu0
        %717 = vxpose.xlu0.c.b16.start [1/8] %v529, 128
        %718 = vxpose.xlu0.c.b16.cont [2/8] 0, 128
        %719 = vxpose.xlu0.c.b16.cont [3/8] 0, 128
        %720 = vxpose.xlu0.c.b16.cont [4/8] 0, 128
        %721 = vxpose.xlu0.c.b16.cont [5/8] 0, 128
        %722 = vxpose.xlu0.c.b16.cont [6/8] 0, 128
        %723 = vxpose.xlu0.c.b16.cont [7/8] 0, 128
        %724 = vxpose.xlu0.c.b16.end [8/8] 0, 128
        %v725 = vpop.trf.xlu0
        %v726 = vpop.trf.xlu0
        %v727 = vpop.trf.xlu0
        %v728 = vpop.trf.xlu0
        %v729 = vpop.trf.xlu0
        %v730 = vpop.trf.xlu0
        %v731 = vpop.trf.xlu0
        %v732 = vpop.trf.xlu0
        %733 = vxpose.xlu0.c.b16.start [1/8] %v530, 128
        %734 = vxpose.xlu0.c.b16.cont [2/8] 0, 128
        %735 = vxpose.xlu0.c.b16.cont [3/8] 0, 128
        %736 = vxpose.xlu0.c.b16.cont [4/8] 0, 128
        %737 = vxpose.xlu0.c.b16.cont [5/8] 0, 128
        %738 = vxpose.xlu0.c.b16.cont [6/8] 0, 128
        %739 = vxpose.xlu0.c.b16.cont [7/8] 0, 128
        %740 = vxpose.xlu0.c.b16.end [8/8] 0, 128
        %v741 = vpop.trf.xlu0
        %v742 = vpop.trf.xlu0
        %v743 = vpop.trf.xlu0
        %v744 = vpop.trf.xlu0
        %v745 = vpop.trf.xlu0
        %v746 = vpop.trf.xlu0
        %v747 = vpop.trf.xlu0
        %v748 = vpop.trf.xlu0
        %749 = vxpose.xlu0.c.b16.start [1/8] %v531, 128
        %750 = vxpose.xlu0.c.b16.cont [2/8] 0, 128
        %751 = vxpose.xlu0.c.b16.cont [3/8] 0, 128
        %752 = vxpose.xlu0.c.b16.cont [4/8] 0, 128
        %753 = vxpose.xlu0.c.b16.cont [5/8] 0, 128
        %754 = vxpose.xlu0.c.b16.cont [6/8] 0, 128
        %755 = vxpose.xlu0.c.b16.cont [7/8] 0, 128
        %756 = vxpose.xlu0.c.b16.end [8/8] 0, 128
        %v757 = vpop.trf.xlu0
        %v758 = vpop.trf.xlu0
        %v759 = vpop.trf.xlu0
        %v760 = vpop.trf.xlu0
        %v761 = vpop.trf.xlu0
        %v762 = vpop.trf.xlu0
        %v763 = vpop.trf.xlu0
        %v764 = vpop.trf.xlu0
        %765 = vxpose.xlu0.c.b16.start [1/8] %v532, 128
        %766 = vxpose.xlu0.c.b16.cont [2/8] 0, 128
        %767 = vxpose.xlu0.c.b16.cont [3/8] 0, 128
        %768 = vxpose.xlu0.c.b16.cont [4/8] 0, 128
        %769 = vxpose.xlu0.c.b16.cont [5/8] 0, 128
        %770 = vxpose.xlu0.c.b16.cont [6/8] 0, 128
        %771 = vxpose.xlu0.c.b16.cont [7/8] 0, 128
        %772 = vxpose.xlu0.c.b16.end [8/8] 0, 128
        %v773 = vpop.trf.xlu0
        %v774 = vpop.trf.xlu0
        %v775 = vpop.trf.xlu0
        %v776 = vpop.trf.xlu0
        %v777 = vpop.trf.xlu0
        %v778 = vpop.trf.xlu0
        %v779 = vpop.trf.xlu0
        %v780 = vpop.trf.xlu0
        %781 = vxpose.xlu0.c.b16.start [1/8] %v533, 128
        %782 = vxpose.xlu0.c.b16.cont [2/8] 0, 128
        %783 = vxpose.xlu0.c.b16.cont [3/8] 0, 128
        %784 = vxpose.xlu0.c.b16.cont [4/8] 0, 128
        %785 = vxpose.xlu0.c.b16.cont [5/8] 0, 128
        %786 = vxpose.xlu0.c.b16.cont [6/8] 0, 128
        %787 = vxpose.xlu0.c.b16.cont [7/8] 0, 128
        %788 = vxpose.xlu0.c.b16.end [8/8] 0, 128
        %v789 = vpop.trf.xlu0
        %v790 = vpop.trf.xlu0
        %v791 = vpop.trf.xlu0
        %v792 = vpop.trf.xlu0
        %v793 = vpop.trf.xlu0
        %v794 = vpop.trf.xlu0
        %v795 = vpop.trf.xlu0
        %v796 = vpop.trf.xlu0
        %797 = vxpose.xlu0.c.b16.start [1/8] %v534, 128
        %798 = vxpose.xlu0.c.b16.cont [2/8] 0, 128
        %799 = vxpose.xlu0.c.b16.cont [3/8] 0, 128
        %800 = vxpose.xlu0.c.b16.cont [4/8] 0, 128
        %801 = vxpose.xlu0.c.b16.cont [5/8] 0, 128
        %802 = vxpose.xlu0.c.b16.cont [6/8] 0, 128
        %803 = vxpose.xlu0.c.b16.cont [7/8] 0, 128
        %804 = vxpose.xlu0.c.b16.end [8/8] 0, 128
        %v805 = vpop.trf.xlu0
        %v806 = vpop.trf.xlu0
        %v807 = vpop.trf.xlu0
        %v808 = vpop.trf.xlu0
        %v809 = vpop.trf.xlu0
        %v810 = vpop.trf.xlu0
        %v811 = vpop.trf.xlu0
        %v812 = vpop.trf.xlu0
        %v813 = vcombine.low %v693, %v757
        %v815 = vunpack.c.l.s4 1983009808
        %v816 = vunpack.c.0.s8 %v815
        %v817 = vlaneseq
        %v818 = vshrl.u32 %v817, 7
        %v819 = vsub.s32 %v816, %v818
        %v820 = vrot.slane %v813, %v819
        %v821 = vcombine.low %v725, %v789
        %v823 = vunpack.c.l.s4 1983009808
        %v824 = vunpack.c.0.s8 %v823
        %v825 = vlaneseq
        %v826 = vshrl.u32 %v825, 7
        %v827 = vsub.s32 %v824, %v826
        %v828 = vrot.slane %v821, %v827
        %v829 = vcombine.low %v820, %v828
        %v830 = vcombine.high %v820, %v828
        %v832 = vunpack.c.l.s4 1934713408
        %v833 = vunpack.c.0.s8 %v832
        %v834 = vlaneseq
        %v835 = vshrl.u32 %v834, 7
        %v836 = vsub.s32 %v833, %v835
        %v837 = vrot.slane %v829, %v836
        %v839 = vunpack.c.l.s4 1934713408
        %v840 = vunpack.c.0.s8 %v839
        %v841 = vlaneseq
        %v842 = vshrl.u32 %v841, 7
        %v843 = vsub.s32 %v840, %v842
        %v844 = vrot.slane %v830, %v843
        %v845 = vcombine.high %v837, 0
        %v846 = vcombine.high %v844, 0
        %v847 = vcombine.low %v709, %v773
        %v849 = vunpack.c.l.s4 1983009808
        %v850 = vunpack.c.0.s8 %v849
        %v851 = vlaneseq
        %v852 = vshrl.u32 %v851, 7
        %v853 = vsub.s32 %v850, %v852
        %v854 = vrot.slane %v847, %v853
        %v855 = vcombine.low %v741, %v805
        %v857 = vunpack.c.l.s4 1983009808
        %v858 = vunpack.c.0.s8 %v857
        %v859 = vlaneseq
        %v860 = vshrl.u32 %v859, 7
        %v861 = vsub.s32 %v858, %v860
        %v862 = vrot.slane %v855, %v861
        %v863 = vcombine.low %v854, %v862
        %v864 = vcombine.high %v854, %v862
        %v866 = vunpack.c.l.s4 1934713408
        %v867 = vunpack.c.0.s8 %v866
        %v868 = vlaneseq
        %v869 = vshrl.u32 %v868, 7
        %v870 = vsub.s32 %v867, %v869
        %v871 = vrot.slane %v863, %v870
        %v873 = vunpack.c.l.s4 1934713408
        %v874 = vunpack.c.0.s8 %v873
        %v875 = vlaneseq
        %v876 = vshrl.u32 %v875, 7
        %v877 = vsub.s32 %v874, %v876
        %v878 = vrot.slane %v864, %v877
        %v879 = vcombine.high %v871, 0
        %v880 = vcombine.high %v878, 0
        %v883 = vpack.i.b16 %v871, %v837
        %v885 = vshrl.u32 %v837, 16
        %v886 = vshrl.u32 %v871, 16
        %v887 = vpack.i.b16 %v886, %v885
        %v891 = vpack.i.b16 %v879, %v845
        %v893 = vshrl.u32 %v845, 16
        %v894 = vshrl.u32 %v879, 16
        %v895 = vpack.i.b16 %v894, %v893
        %v899 = vpack.i.b16 %v878, %v844
        %v901 = vshrl.u32 %v844, 16
        %v902 = vshrl.u32 %v878, 16
        %v903 = vpack.i.b16 %v902, %v901
        %v907 = vpack.i.b16 %v880, %v846
        %v909 = vshrl.u32 %v846, 16
        %v910 = vshrl.u32 %v880, 16
        %v911 = vpack.i.b16 %v910, %v909
        %913 = vxpose.xlu0.c.b16.start [1/8] %v883, 128
        %914 = vxpose.xlu0.c.b16.cont [2/8] 0, 128
        %915 = vxpose.xlu0.c.b16.cont [3/8] 0, 128
        %916 = vxpose.xlu0.c.b16.cont [4/8] 0, 128
        %917 = vxpose.xlu0.c.b16.cont [5/8] 0, 128
        %918 = vxpose.xlu0.c.b16.cont [6/8] 0, 128
        %919 = vxpose.xlu0.c.b16.cont [7/8] 0, 128
        %920 = vxpose.xlu0.c.b16.end [8/8] 0, 128
        %v921 = vpop.trf.xlu0
        %v922 = vpop.trf.xlu0
        %v923 = vpop.trf.xlu0
        %v924 = vpop.trf.xlu0
        %v925 = vpop.trf.xlu0
        %v926 = vpop.trf.xlu0
        %v927 = vpop.trf.xlu0
        %v928 = vpop.trf.xlu0
        %929 = vxpose.xlu0.c.b16.start [1/8] %v887, 128
        %930 = vxpose.xlu0.c.b16.cont [2/8] 0, 128
        %931 = vxpose.xlu0.c.b16.cont [3/8] 0, 128
        %932 = vxpose.xlu0.c.b16.cont [4/8] 0, 128
        %933 = vxpose.xlu0.c.b16.cont [5/8] 0, 128
        %934 = vxpose.xlu0.c.b16.cont [6/8] 0, 128
        %935 = vxpose.xlu0.c.b16.cont [7/8] 0, 128
        %936 = vxpose.xlu0.c.b16.end [8/8] 0, 128
        %v937 = vpop.trf.xlu0
        %v938 = vpop.trf.xlu0
        %v939 = vpop.trf.xlu0
        %v940 = vpop.trf.xlu0
        %v941 = vpop.trf.xlu0
        %v942 = vpop.trf.xlu0
        %v943 = vpop.trf.xlu0
        %v944 = vpop.trf.xlu0
        %945 = vxpose.xlu0.c.b16.start [1/8] %v891, 128
        %946 = vxpose.xlu0.c.b16.cont [2/8] 0, 128
        %947 = vxpose.xlu0.c.b16.cont [3/8] 0, 128
        %948 = vxpose.xlu0.c.b16.cont [4/8] 0, 128
        %949 = vxpose.xlu0.c.b16.cont [5/8] 0, 128
        %950 = vxpose.xlu0.c.b16.cont [6/8] 0, 128
        %951 = vxpose.xlu0.c.b16.cont [7/8] 0, 128
        %952 = vxpose.xlu0.c.b16.end [8/8] 0, 128
        %v953 = vpop.trf.xlu0
        %v954 = vpop.trf.xlu0
        %v955 = vpop.trf.xlu0
        %v956 = vpop.trf.xlu0
        %v957 = vpop.trf.xlu0
        %v958 = vpop.trf.xlu0
        %v959 = vpop.trf.xlu0
        %v960 = vpop.trf.xlu0
        %961 = vxpose.xlu0.c.b16.start [1/8] %v895, 128
        %962 = vxpose.xlu0.c.b16.cont [2/8] 0, 128
        %963 = vxpose.xlu0.c.b16.cont [3/8] 0, 128
        %964 = vxpose.xlu0.c.b16.cont [4/8] 0, 128
        %965 = vxpose.xlu0.c.b16.cont [5/8] 0, 128
        %966 = vxpose.xlu0.c.b16.cont [6/8] 0, 128
        %967 = vxpose.xlu0.c.b16.cont [7/8] 0, 128
        %968 = vxpose.xlu0.c.b16.end [8/8] 0, 128
        %v969 = vpop.trf.xlu0
        %v970 = vpop.trf.xlu0
        %v971 = vpop.trf.xlu0
        %v972 = vpop.trf.xlu0
        %v973 = vpop.trf.xlu0
        %v974 = vpop.trf.xlu0
        %v975 = vpop.trf.xlu0
        %v976 = vpop.trf.xlu0
        %977 = vxpose.xlu0.c.b16.start [1/8] %v899, 128
        %978 = vxpose.xlu0.c.b16.cont [2/8] 0, 128
        %979 = vxpose.xlu0.c.b16.cont [3/8] 0, 128
        %980 = vxpose.xlu0.c.b16.cont [4/8] 0, 128
        %981 = vxpose.xlu0.c.b16.cont [5/8] 0, 128
        %982 = vxpose.xlu0.c.b16.cont [6/8] 0, 128
        %983 = vxpose.xlu0.c.b16.cont [7/8] 0, 128
        %984 = vxpose.xlu0.c.b16.end [8/8] 0, 128
        %v985 = vpop.trf.xlu0
        %v986 = vpop.trf.xlu0
        %v987 = vpop.trf.xlu0
        %v988 = vpop.trf.xlu0
        %v989 = vpop.trf.xlu0
        %v990 = vpop.trf.xlu0
        %v991 = vpop.trf.xlu0
        %v992 = vpop.trf.xlu0
        %993 = vxpose.xlu0.c.b16.start [1/8] %v903, 128
        %994 = vxpose.xlu0.c.b16.cont [2/8] 0, 128
        %995 = vxpose.xlu0.c.b16.cont [3/8] 0, 128
        %996 = vxpose.xlu0.c.b16.cont [4/8] 0, 128
        %997 = vxpose.xlu0.c.b16.cont [5/8] 0, 128
        %998 = vxpose.xlu0.c.b16.cont [6/8] 0, 128
        %999 = vxpose.xlu0.c.b16.cont [7/8] 0, 128
        %1000 = vxpose.xlu0.c.b16.end [8/8] 0, 128
        %v1001 = vpop.trf.xlu0
        %v1002 = vpop.trf.xlu0
        %v1003 = vpop.trf.xlu0
        %v1004 = vpop.trf.xlu0
        %v1005 = vpop.trf.xlu0
        %v1006 = vpop.trf.xlu0
        %v1007 = vpop.trf.xlu0
        %v1008 = vpop.trf.xlu0
        %1009 = vxpose.xlu0.c.b16.start [1/8] %v907, 128
        %1010 = vxpose.xlu0.c.b16.cont [2/8] 0, 128
        %1011 = vxpose.xlu0.c.b16.cont [3/8] 0, 128
        %1012 = vxpose.xlu0.c.b16.cont [4/8] 0, 128
        %1013 = vxpose.xlu0.c.b16.cont [5/8] 0, 128
        %1014 = vxpose.xlu0.c.b16.cont [6/8] 0, 128
        %1015 = vxpose.xlu0.c.b16.cont [7/8] 0, 128
        %1016 = vxpose.xlu0.c.b16.end [8/8] 0, 128
        %v1017 = vpop.trf.xlu0
        %v1018 = vpop.trf.xlu0
        %v1019 = vpop.trf.xlu0
        %v1020 = vpop.trf.xlu0
        %v1021 = vpop.trf.xlu0
        %v1022 = vpop.trf.xlu0
        %v1023 = vpop.trf.xlu0
        %v1024 = vpop.trf.xlu0
        %1025 = vxpose.xlu0.c.b16.start [1/8] %v911, 128
        %1026 = vxpose.xlu0.c.b16.cont [2/8] 0, 128
        %1027 = vxpose.xlu0.c.b16.cont [3/8] 0, 128
        %1028 = vxpose.xlu0.c.b16.cont [4/8] 0, 128
        %1029 = vxpose.xlu0.c.b16.cont [5/8] 0, 128
        %1030 = vxpose.xlu0.c.b16.cont [6/8] 0, 128
        %1031 = vxpose.xlu0.c.b16.cont [7/8] 0, 128
        %1032 = vxpose.xlu0.c.b16.end [8/8] 0, 128
        %v1033 = vpop.trf.xlu0
        %v1034 = vpop.trf.xlu0
        %v1035 = vpop.trf.xlu0
        %v1036 = vpop.trf.xlu0
        %v1037 = vpop.trf.xlu0
        %v1038 = vpop.trf.xlu0
        %v1039 = vpop.trf.xlu0
        %v1040 = vpop.trf.xlu0
        %v1041 = vcombine.low %v921, %v985
        %v1043 = vunpack.c.l.s4 1983009808
        %v1044 = vunpack.c.0.s8 %v1043
        %v1045 = vlaneseq
        %v1046 = vshrl.u32 %v1045, 7
        %v1047 = vsub.s32 %v1044, %v1046
        %v1048 = vrot.slane %v1041, %v1047
        %v1049 = vcombine.low %v953, %v1017
        %v1051 = vunpack.c.l.s4 1983009808
        %v1052 = vunpack.c.0.s8 %v1051
        %v1053 = vlaneseq
        %v1054 = vshrl.u32 %v1053, 7
        %v1055 = vsub.s32 %v1052, %v1054
        %v1056 = vrot.slane %v1049, %v1055
        %v1057 = vcombine.low %v1048, %v1056
        %v1059 = vunpack.c.l.s4 1934713408
        %v1060 = vunpack.c.0.s8 %v1059
        %v1061 = vlaneseq
        %v1062 = vshrl.u32 %v1061, 7
        %v1063 = vsub.s32 %v1060, %v1062
        %v1064 = vrot.slane %v1057, %v1063
        %v1065 = vcombine.high %v1064, 0
        %v1066 = vcombine.low %v937, %v1001
        %v1068 = vunpack.c.l.s4 1983009808
        %v1069 = vunpack.c.0.s8 %v1068
        %v1070 = vlaneseq
        %v1071 = vshrl.u32 %v1070, 7
        %v1072 = vsub.s32 %v1069, %v1071
        %v1073 = vrot.slane %v1066, %v1072
        %v1074 = vcombine.low %v969, %v1033
        %v1076 = vunpack.c.l.s4 1983009808
        %v1077 = vunpack.c.0.s8 %v1076
        %v1078 = vlaneseq
        %v1079 = vshrl.u32 %v1078, 7
        %v1080 = vsub.s32 %v1077, %v1079
        %v1081 = vrot.slane %v1074, %v1080
        %v1082 = vcombine.low %v1073, %v1081
        %v1084 = vunpack.c.l.s4 1934713408
        %v1085 = vunpack.c.0.s8 %v1084
        %v1086 = vlaneseq
        %v1087 = vshrl.u32 %v1086, 7
        %v1088 = vsub.s32 %v1085, %v1087
        %v1089 = vrot.slane %v1082, %v1088
        %v1090 = vcombine.high %v1089, 0
        %v1093 = vpack.i.b16 %v1089, %v1064
        %v1094 = vshrl.u32 %v1064, 16
        %v1095 = vshrl.u32 %v1089, 16
        %v1096 = vpack.i.b16 %v1095, %v1094
        %v1099 = vpack.i.b16 %v1090, %v1065
        %v1100 = vshrl.u32 %v1065, 16
        %v1101 = vshrl.u32 %v1090, 16
        %v1102 = vpack.i.b16 %v1101, %v1100
        %vm1103 = vcmask 64512
        %v1105 = vsel %vm1103, %v675, 0
        %vm1107 = vcmask 1043456
        %v1109 = vsel %vm1107, %v1093, 0
        %1111 = vmatprep.subr.bf16.mxu0 0
        %1112 = vmatpush1.bf16.msra.mxu0 %v1109
        %1113 = vmatprep.subr.bf16.mxu0 0
        %1114 = vmatpush1.bf16.msra.mxu0 0
        %1115 = vmatprep.subr.bf16.mxu0 0
        %1116 = vmatpush1.bf16.msra.mxu0 0
        %1117 = vmatprep.subr.bf16.mxu0 0
        %1118 = vmatpush1.bf16.msra.mxu0 0
        %1119 = vmatprep.subr.bf16.mxu0 0
        %1120 = vmatpush1.bf16.msra.mxu0 0
        %1121 = vmatprep.subr.bf16.mxu0 0
        %1122 = vmatpush1.bf16.msra.mxu0 0
        %1123 = vmatprep.subr.bf16.mxu0 0
        %1124 = vmatpush1.bf16.msra.mxu0 0
        %1125 = vmatprep.subr.bf16.mxu0 0
        %1126 = vmatpush1.bf16.msra.mxu0 0
        %1127 = vmatprep.subr.bf16.mxu0 0
        %1128 = vmatpush1.bf16.msra.mxu0 0
        %1129 = vmatprep.subr.bf16.mxu0 0
        %1130 = vmatpush1.bf16.msra.mxu0 0
        %1131 = vmatprep.subr.bf16.mxu0 0
        %1132 = vmatpush1.bf16.msra.mxu0 0
        %1133 = vmatprep.subr.bf16.mxu0 0
        %1134 = vmatpush1.bf16.msra.mxu0 0
        %1135 = vmatprep.subr.bf16.mxu0 0
        %1136 = vmatpush1.bf16.msra.mxu0 0
        %1137 = vmatprep.subr.bf16.mxu0 0
        %1138 = vmatpush1.bf16.msra.mxu0 0
        %1139 = vmatprep.subr.bf16.mxu0 0
        %1140 = vmatpush1.bf16.msra.mxu0 0
        %1141 = vmatprep.subr.bf16.mxu0 0
        %1142 = vmatpush1.bf16.msra.mxu0 0
        %1143 = vmatprep.mubr.bf16.mxu0 0
        %1144 = vmatmul.mubr.bf16.gmra.mrb[0].mxu0 %v1105
        %v1145 = vpop.f32.mrb[0].mxu0
        %v1146 = vadd.f32 0.0, %v1145
        %v1147 = vpop.f32.mrb[0].mxu0
        %v1148 = vpop.f32.mrb[0].mxu0
        %v1149 = vpop.f32.mrb[0].mxu0
        %1150 = vdwg.mxu0
        %v1152 = vsel %vm1103, %v678, 0
        %v1155 = vsel %vm1107, %v1096, 0
        %1157 = vmatprep.subr.bf16.mxu0 0
        %1158 = vmatpush1.bf16.msra.mxu0 %v1155
        %1159 = vmatprep.subr.bf16.mxu0 0
        %1160 = vmatpush1.bf16.msra.mxu0 0
        %1161 = vmatprep.subr.bf16.mxu0 0
        %1162 = vmatpush1.bf16.msra.mxu0 0
        %1163 = vmatprep.subr.bf16.mxu0 0
        %1164 = vmatpush1.bf16.msra.mxu0 0
        %1165 = vmatprep.subr.bf16.mxu0 0
        %1166 = vmatpush1.bf16.msra.mxu0 0
        %1167 = vmatprep.subr.bf16.mxu0 0
        %1168 = vmatpush1.bf16.msra.mxu0 0
        %1169 = vmatprep.subr.bf16.mxu0 0
        %1170 = vmatpush1.bf16.msra.mxu0 0
        %1171 = vmatprep.subr.bf16.mxu0 0
        %1172 = vmatpush1.bf16.msra.mxu0 0
        %1173 = vmatprep.subr.bf16.mxu0 0
        %1174 = vmatpush1.bf16.msra.mxu0 0
        %1175 = vmatprep.subr.bf16.mxu0 0
        %1176 = vmatpush1.bf16.msra.mxu0 0
        %1177 = vmatprep.subr.bf16.mxu0 0
        %1178 = vmatpush1.bf16.msra.mxu0 0
        %1179 = vmatprep.subr.bf16.mxu0 0
        %1180 = vmatpush1.bf16.msra.mxu0 0
        %1181 = vmatprep.subr.bf16.mxu0 0
        %1182 = vmatpush1.bf16.msra.mxu0 0
        %1183 = vmatprep.subr.bf16.mxu0 0
        %1184 = vmatpush1.bf16.msra.mxu0 0
        %1185 = vmatprep.subr.bf16.mxu0 0
        %1186 = vmatpush1.bf16.msra.mxu0 0
        %1187 = vmatprep.subr.bf16.mxu0 0
        %1188 = vmatpush1.bf16.msra.mxu0 0
        %1189 = vmatprep.mubr.bf16.mxu0 0
        %1190 = vmatmul.mubr.bf16.gmra.mrb[0].mxu0 %v1152
        %v1191 = vpop.f32.mrb[0].mxu0
        %v1192 = vadd.f32 0.0, %v1191
        %v1193 = vpop.f32.mrb[0].mxu0
        %v1194 = vpop.f32.mrb[0].mxu0
        %v1195 = vpop.f32.mrb[0].mxu0
        %1196 = vdwg.mxu0
        %v1198 = vsel %vm1103, %v681, 0
        %v1201 = vsel %vm1107, %v1099, 0
        %1203 = vmatprep.subr.bf16.mxu0 0
        %1204 = vmatpush1.bf16.msra.mxu0 %v1201
        %1205 = vmatprep.subr.bf16.mxu0 0
        %1206 = vmatpush1.bf16.msra.mxu0 0
        %1207 = vmatprep.subr.bf16.mxu0 0
        %1208 = vmatpush1.bf16.msra.mxu0 0
        %1209 = vmatprep.subr.bf16.mxu0 0
        %1210 = vmatpush1.bf16.msra.mxu0 0
        %1211 = vmatprep.subr.bf16.mxu0 0
        %1212 = vmatpush1.bf16.msra.mxu0 0
        %1213 = vmatprep.subr.bf16.mxu0 0
        %1214 = vmatpush1.bf16.msra.mxu0 0
        %1215 = vmatprep.subr.bf16.mxu0 0
        %1216 = vmatpush1.bf16.msra.mxu0 0
        %1217 = vmatprep.subr.bf16.mxu0 0
        %1218 = vmatpush1.bf16.msra.mxu0 0
        %1219 = vmatprep.subr.bf16.mxu0 0
        %1220 = vmatpush1.bf16.msra.mxu0 0
        %1221 = vmatprep.subr.bf16.mxu0 0
        %1222 = vmatpush1.bf16.msra.mxu0 0
        %1223 = vmatprep.subr.bf16.mxu0 0
        %1224 = vmatpush1.bf16.msra.mxu0 0
        %1225 = vmatprep.subr.bf16.mxu0 0
        %1226 = vmatpush1.bf16.msra.mxu0 0
        %1227 = vmatprep.subr.bf16.mxu0 0
        %1228 = vmatpush1.bf16.msra.mxu0 0
        %1229 = vmatprep.subr.bf16.mxu0 0
        %1230 = vmatpush1.bf16.msra.mxu0 0
        %1231 = vmatprep.subr.bf16.mxu0 0
        %1232 = vmatpush1.bf16.msra.mxu0 0
        %1233 = vmatprep.subr.bf16.mxu0 0
        %1234 = vmatpush1.bf16.msra.mxu0 0
        %1235 = vmatprep.mubr.bf16.mxu0 0
        %1236 = vmatmul.mubr.bf16.gmra.mrb[0].mxu0 %v1198
        %v1237 = vpop.f32.mrb[0].mxu0
        %v1238 = vadd.f32 0.0, %v1237
        %v1239 = vpop.f32.mrb[0].mxu0
        %v1240 = vpop.f32.mrb[0].mxu0
        %v1241 = vpop.f32.mrb[0].mxu0
        %1242 = vdwg.mxu0
        %v1244 = vsel %vm1103, %v684, 0
        %v1247 = vsel %vm1107, %v1102, 0
        %1249 = vmatprep.subr.bf16.mxu0 0
        %1250 = vmatpush1.bf16.msra.mxu0 %v1247
        %1251 = vmatprep.subr.bf16.mxu0 0
        %1252 = vmatpush1.bf16.msra.mxu0 0
        %1253 = vmatprep.subr.bf16.mxu0 0
        %1254 = vmatpush1.bf16.msra.mxu0 0
        %1255 = vmatprep.subr.bf16.mxu0 0
        %1256 = vmatpush1.bf16.msra.mxu0 0
        %1257 = vmatprep.subr.bf16.mxu0 0
        %1258 = vmatpush1.bf16.msra.mxu0 0
        %1259 = vmatprep.subr.bf16.mxu0 0
        %1260 = vmatpush1.bf16.msra.mxu0 0
        %1261 = vmatprep.subr.bf16.mxu0 0
        %1262 = vmatpush1.bf16.msra.mxu0 0
        %1263 = vmatprep.subr.bf16.mxu0 0
        %1264 = vmatpush1.bf16.msra.mxu0 0
        %1265 = vmatprep.subr.bf16.mxu0 0
        %1266 = vmatpush1.bf16.msra.mxu0 0
        %1267 = vmatprep.subr.bf16.mxu0 0
        %1268 = vmatpush1.bf16.msra.mxu0 0
        %1269 = vmatprep.subr.bf16.mxu0 0
        %1270 = vmatpush1.bf16.msra.mxu0 0
        %1271 = vmatprep.subr.bf16.mxu0 0
        %1272 = vmatpush1.bf16.msra.mxu0 0
        %1273 = vmatprep.subr.bf16.mxu0 0
        %1274 = vmatpush1.bf16.msra.mxu0 0
        %1275 = vmatprep.subr.bf16.mxu0 0
        %1276 = vmatpush1.bf16.msra.mxu0 0
        %1277 = vmatprep.subr.bf16.mxu0 0
        %1278 = vmatpush1.bf16.msra.mxu0 0
        %1279 = vmatprep.subr.bf16.mxu0 0
        %1280 = vmatpush1.bf16.msra.mxu0 0
        %1281 = vmatprep.mubr.bf16.mxu0 0
        %1282 = vmatmul.mubr.bf16.gmra.mrb[0].mxu0 %v1244
        %v1283 = vpop.f32.mrb[0].mxu0
        %v1284 = vadd.f32 0.0, %v1283
        %v1285 = vpop.f32.mrb[0].mxu0
        %v1286 = vpop.f32.mrb[0].mxu0
        %v1287 = vpop.f32.mrb[0].mxu0
        %1288 = vdwg.mxu0
        %v1289 = vsel %vm1103, %v1146, -inf
        %1290 = vmax.xlane.f32.xlu0 %v1289
        %v1291 = vpop.xlane.xlu0 %1290
        %v1292 = vsel %vm1103, %v1192, -inf
        %1293 = vmax.xlane.f32.xlu0 %v1292
        %v1294 = vpop.xlane.xlu0 %1293
        %v1295 = vsel %vm1103, %v1238, -inf
        %1296 = vmax.xlane.f32.xlu0 %v1295
        %v1297 = vpop.xlane.xlu0 %1296
        %v1298 = vsel %vm1103, %v1284, -inf
        %1299 = vmax.xlane.f32.xlu0 %v1298
        %v1300 = vpop.xlane.xlu0 %1299
        %v1301 = vsub.f32 %v1146, %v1291
        %v1302 = vsub.f32 %v1192, %v1294
        %v1303 = vsub.f32 %v1238, %v1297
        %v1304 = vsub.f32 %v1284, %v1300
        %v1305 = vmul.f32 %v1301, 1.442695
        %v1306 = vpow.pop %v1305
        %v1307 = vmul.f32 %v1302, 1.442695
        %v1308 = vpow.pop %v1307
        %v1309 = vmul.f32 %v1303, 1.442695
        %v1310 = vpow.pop %v1309
        %v1311 = vmul.f32 %v1304, 1.442695
        %v1312 = vpow.pop %v1311
        %v1313 = vsel %vm1103, %v1306, 0.0
        %1314 = vadd.xlane.f32.xlu0 %v1313
        %v1315 = vpop.xlane.xlu0 %1314
        %v1316 = vsel %vm1103, %v1308, 0.0
        %1317 = vadd.xlane.f32.xlu0 %v1316
        %v1318 = vpop.xlane.xlu0 %1317
        %v1319 = vsel %vm1103, %v1310, 0.0
        %1320 = vadd.xlane.f32.xlu0 %v1319
        %v1321 = vpop.xlane.xlu0 %1320
        %v1322 = vsel %vm1103, %v1312, 0.0
        %1323 = vadd.xlane.f32.xlu0 %v1322
        %v1324 = vpop.xlane.xlu0 %1323
        %v1325 = vrcp.pop %v1315
        %v1326 = vrcp.pop %v1318
        %v1327 = vrcp.pop %v1321
        %v1328 = vrcp.pop %v1324
        %v1329 = vmul.f32 %v1306, %v1325
        %v1330 = vmul.f32 %v1308, %v1326
        %v1331 = vmul.f32 %v1310, %v1327
        %v1332 = vmul.f32 %v1312, %v1328
        %v1333 = vpack.c.bf16 %v1329, %v1329
        %v1334 = vpack.c.bf16 %v1330, %v1330
        %v1335 = vpack.c.bf16 %v1331, %v1331
        %v1336 = vpack.c.bf16 %v1332, %v1332
        %1337 = vxpose.xlu0.c.b16.start [1/8] %v615, 128
        %1338 = vxpose.xlu0.c.b16.cont [2/8] 0, 128
        %1339 = vxpose.xlu0.c.b16.cont [3/8] 0, 128
        %1340 = vxpose.xlu0.c.b16.cont [4/8] 0, 128
        %1341 = vxpose.xlu0.c.b16.cont [5/8] 0, 128
        %1342 = vxpose.xlu0.c.b16.cont [6/8] 0, 128
        %1343 = vxpose.xlu0.c.b16.cont [7/8] 0, 128
        %1344 = vxpose.xlu0.c.b16.end [8/8] 0, 128
        %v1345 = vpop.trf.xlu0
        %v1346 = vpop.trf.xlu0
        %v1347 = vpop.trf.xlu0
        %v1348 = vpop.trf.xlu0
        %v1349 = vpop.trf.xlu0
        %v1350 = vpop.trf.xlu0
        %v1351 = vpop.trf.xlu0
        %v1352 = vpop.trf.xlu0
        %1353 = vxpose.xlu0.c.b16.start [1/8] %v616, 128
        %1354 = vxpose.xlu0.c.b16.cont [2/8] 0, 128
        %1355 = vxpose.xlu0.c.b16.cont [3/8] 0, 128
        %1356 = vxpose.xlu0.c.b16.cont [4/8] 0, 128
        %1357 = vxpose.xlu0.c.b16.cont [5/8] 0, 128
        %1358 = vxpose.xlu0.c.b16.cont [6/8] 0, 128
        %1359 = vxpose.xlu0.c.b16.cont [7/8] 0, 128
        %1360 = vxpose.xlu0.c.b16.end [8/8] 0, 128
        %v1361 = vpop.trf.xlu0
        %v1362 = vpop.trf.xlu0
        %v1363 = vpop.trf.xlu0
        %v1364 = vpop.trf.xlu0
        %v1365 = vpop.trf.xlu0
        %v1366 = vpop.trf.xlu0
        %v1367 = vpop.trf.xlu0
        %v1368 = vpop.trf.xlu0
        %1369 = vxpose.xlu0.c.b16.start [1/8] %v617, 128
        %1370 = vxpose.xlu0.c.b16.cont [2/8] 0, 128
        %1371 = vxpose.xlu0.c.b16.cont [3/8] 0, 128
        %1372 = vxpose.xlu0.c.b16.cont [4/8] 0, 128
        %1373 = vxpose.xlu0.c.b16.cont [5/8] 0, 128
        %1374 = vxpose.xlu0.c.b16.cont [6/8] 0, 128
        %1375 = vxpose.xlu0.c.b16.cont [7/8] 0, 128
        %1376 = vxpose.xlu0.c.b16.end [8/8] 0, 128
        %v1377 = vpop.trf.xlu0
        %v1378 = vpop.trf.xlu0
        %v1379 = vpop.trf.xlu0
        %v1380 = vpop.trf.xlu0
        %v1381 = vpop.trf.xlu0
        %v1382 = vpop.trf.xlu0
        %v1383 = vpop.trf.xlu0
        %v1384 = vpop.trf.xlu0
        %1385 = vxpose.xlu0.c.b16.start [1/8] %v618, 128
        %1386 = vxpose.xlu0.c.b16.cont [2/8] 0, 128
        %1387 = vxpose.xlu0.c.b16.cont [3/8] 0, 128
        %1388 = vxpose.xlu0.c.b16.cont [4/8] 0, 128
        %1389 = vxpose.xlu0.c.b16.cont [5/8] 0, 128
        %1390 = vxpose.xlu0.c.b16.cont [6/8] 0, 128
        %1391 = vxpose.xlu0.c.b16.cont [7/8] 0, 128
        %1392 = vxpose.xlu0.c.b16.end [8/8] 0, 128
        %v1393 = vpop.trf.xlu0
        %v1394 = vpop.trf.xlu0
        %v1395 = vpop.trf.xlu0
        %v1396 = vpop.trf.xlu0
        %v1397 = vpop.trf.xlu0
        %v1398 = vpop.trf.xlu0
        %v1399 = vpop.trf.xlu0
        %v1400 = vpop.trf.xlu0
        %1401 = vxpose.xlu0.c.b16.start [1/8] %v619, 128
        %1402 = vxpose.xlu0.c.b16.cont [2/8] 0, 128
        %1403 = vxpose.xlu0.c.b16.cont [3/8] 0, 128
        %1404 = vxpose.xlu0.c.b16.cont [4/8] 0, 128
        %1405 = vxpose.xlu0.c.b16.cont [5/8] 0, 128
        %1406 = vxpose.xlu0.c.b16.cont [6/8] 0, 128
        %1407 = vxpose.xlu0.c.b16.cont [7/8] 0, 128
        %1408 = vxpose.xlu0.c.b16.end [8/8] 0, 128
        %v1409 = vpop.trf.xlu0
        %v1410 = vpop.trf.xlu0
        %v1411 = vpop.trf.xlu0
        %v1412 = vpop.trf.xlu0
        %v1413 = vpop.trf.xlu0
        %v1414 = vpop.trf.xlu0
        %v1415 = vpop.trf.xlu0
        %v1416 = vpop.trf.xlu0
        %1417 = vxpose.xlu0.c.b16.start [1/8] %v620, 128
        %1418 = vxpose.xlu0.c.b16.cont [2/8] 0, 128
        %1419 = vxpose.xlu0.c.b16.cont [3/8] 0, 128
        %1420 = vxpose.xlu0.c.b16.cont [4/8] 0, 128
        %1421 = vxpose.xlu0.c.b16.cont [5/8] 0, 128
        %1422 = vxpose.xlu0.c.b16.cont [6/8] 0, 128
        %1423 = vxpose.xlu0.c.b16.cont [7/8] 0, 128
        %1424 = vxpose.xlu0.c.b16.end [8/8] 0, 128
        %v1425 = vpop.trf.xlu0
        %v1426 = vpop.trf.xlu0
        %v1427 = vpop.trf.xlu0
        %v1428 = vpop.trf.xlu0
        %v1429 = vpop.trf.xlu0
        %v1430 = vpop.trf.xlu0
        %v1431 = vpop.trf.xlu0
        %v1432 = vpop.trf.xlu0
        %1433 = vxpose.xlu0.c.b16.start [1/8] %v621, 128
        %1434 = vxpose.xlu0.c.b16.cont [2/8] 0, 128
        %1435 = vxpose.xlu0.c.b16.cont [3/8] 0, 128
        %1436 = vxpose.xlu0.c.b16.cont [4/8] 0, 128
        %1437 = vxpose.xlu0.c.b16.cont [5/8] 0, 128
        %1438 = vxpose.xlu0.c.b16.cont [6/8] 0, 128
        %1439 = vxpose.xlu0.c.b16.cont [7/8] 0, 128
        %1440 = vxpose.xlu0.c.b16.end [8/8] 0, 128
        %v1441 = vpop.trf.xlu0
        %v1442 = vpop.trf.xlu0
        %v1443 = vpop.trf.xlu0
        %v1444 = vpop.trf.xlu0
        %v1445 = vpop.trf.xlu0
        %v1446 = vpop.trf.xlu0
        %v1447 = vpop.trf.xlu0
        %v1448 = vpop.trf.xlu0
        %1449 = vxpose.xlu0.c.b16.start [1/8] %v622, 128
        %1450 = vxpose.xlu0.c.b16.cont [2/8] 0, 128
        %1451 = vxpose.xlu0.c.b16.cont [3/8] 0, 128
        %1452 = vxpose.xlu0.c.b16.cont [4/8] 0, 128
        %1453 = vxpose.xlu0.c.b16.cont [5/8] 0, 128
        %1454 = vxpose.xlu0.c.b16.cont [6/8] 0, 128
        %1455 = vxpose.xlu0.c.b16.cont [7/8] 0, 128
        %1456 = vxpose.xlu0.c.b16.end [8/8] 0, 128
        %v1457 = vpop.trf.xlu0
        %v1458 = vpop.trf.xlu0
        %v1459 = vpop.trf.xlu0
        %v1460 = vpop.trf.xlu0
        %v1461 = vpop.trf.xlu0
        %v1462 = vpop.trf.xlu0
        %v1463 = vpop.trf.xlu0
        %v1464 = vpop.trf.xlu0
        %v1465 = vcombine.low %v1345, %v1409
        %v1467 = vunpack.c.l.s4 1983009808
        %v1468 = vunpack.c.0.s8 %v1467
        %v1469 = vlaneseq
        %v1470 = vshrl.u32 %v1469, 7
        %v1471 = vsub.s32 %v1468, %v1470
        %v1472 = vrot.slane %v1465, %v1471
        %v1473 = vcombine.low %v1377, %v1441
        %v1475 = vunpack.c.l.s4 1983009808
        %v1476 = vunpack.c.0.s8 %v1475
        %v1477 = vlaneseq
        %v1478 = vshrl.u32 %v1477, 7
        %v1479 = vsub.s32 %v1476, %v1478
        %v1480 = vrot.slane %v1473, %v1479
        %v1481 = vcombine.low %v1472, %v1480
        %v1482 = vcombine.high %v1472, %v1480
        %v1484 = vunpack.c.l.s4 1934713408
        %v1485 = vunpack.c.0.s8 %v1484
        %v1486 = vlaneseq
        %v1487 = vshrl.u32 %v1486, 7
        %v1488 = vsub.s32 %v1485, %v1487
        %v1489 = vrot.slane %v1481, %v1488
        %v1491 = vunpack.c.l.s4 1934713408
        %v1492 = vunpack.c.0.s8 %v1491
        %v1493 = vlaneseq
        %v1494 = vshrl.u32 %v1493, 7
        %v1495 = vsub.s32 %v1492, %v1494
        %v1496 = vrot.slane %v1482, %v1495
        %v1497 = vcombine.high %v1489, 0
        %v1498 = vcombine.high %v1496, 0
        %v1499 = vcombine.low %v1361, %v1425
        %v1501 = vunpack.c.l.s4 1983009808
        %v1502 = vunpack.c.0.s8 %v1501
        %v1503 = vlaneseq
        %v1504 = vshrl.u32 %v1503, 7
        %v1505 = vsub.s32 %v1502, %v1504
        %v1506 = vrot.slane %v1499, %v1505
        %v1507 = vcombine.low %v1393, %v1457
        %v1509 = vunpack.c.l.s4 1983009808
        %v1510 = vunpack.c.0.s8 %v1509
        %v1511 = vlaneseq
        %v1512 = vshrl.u32 %v1511, 7
        %v1513 = vsub.s32 %v1510, %v1512
        %v1514 = vrot.slane %v1507, %v1513
        %v1515 = vcombine.low %v1506, %v1514
        %v1516 = vcombine.high %v1506, %v1514
        %v1518 = vunpack.c.l.s4 1934713408
        %v1519 = vunpack.c.0.s8 %v1518
        %v1520 = vlaneseq
        %v1521 = vshrl.u32 %v1520, 7
        %v1522 = vsub.s32 %v1519, %v1521
        %v1523 = vrot.slane %v1515, %v1522
        %v1525 = vunpack.c.l.s4 1934713408
        %v1526 = vunpack.c.0.s8 %v1525
        %v1527 = vlaneseq
        %v1528 = vshrl.u32 %v1527, 7
        %v1529 = vsub.s32 %v1526, %v1528
        %v1530 = vrot.slane %v1516, %v1529
        %v1531 = vcombine.high %v1523, 0
        %v1532 = vcombine.high %v1530, 0
        %v1535 = vpack.i.b16 %v1523, %v1489
        %v1537 = vshrl.u32 %v1489, 16
        %v1538 = vshrl.u32 %v1523, 16
        %v1539 = vpack.i.b16 %v1538, %v1537
        %v1543 = vpack.i.b16 %v1531, %v1497
        %v1545 = vshrl.u32 %v1497, 16
        %v1546 = vshrl.u32 %v1531, 16
        %v1547 = vpack.i.b16 %v1546, %v1545
        %v1551 = vpack.i.b16 %v1530, %v1496
        %v1553 = vshrl.u32 %v1496, 16
        %v1554 = vshrl.u32 %v1530, 16
        %v1555 = vpack.i.b16 %v1554, %v1553
        %v1559 = vpack.i.b16 %v1532, %v1498
        %v1561 = vshrl.u32 %v1498, 16
        %v1562 = vshrl.u32 %v1532, 16
        %v1563 = vpack.i.b16 %v1562, %v1561
        %1565 = vxpose.xlu0.c.b16.start [1/8] %v1535, 128
        %1566 = vxpose.xlu0.c.b16.cont [2/8] 0, 128
        %1567 = vxpose.xlu0.c.b16.cont [3/8] 0, 128
        %1568 = vxpose.xlu0.c.b16.cont [4/8] 0, 128
        %1569 = vxpose.xlu0.c.b16.cont [5/8] 0, 128
        %1570 = vxpose.xlu0.c.b16.cont [6/8] 0, 128
        %1571 = vxpose.xlu0.c.b16.cont [7/8] 0, 128
        %1572 = vxpose.xlu0.c.b16.end [8/8] 0, 128
        %v1573 = vpop.trf.xlu0
        %v1574 = vpop.trf.xlu0
        %v1575 = vpop.trf.xlu0
        %v1576 = vpop.trf.xlu0
        %v1577 = vpop.trf.xlu0
        %v1578 = vpop.trf.xlu0
        %v1579 = vpop.trf.xlu0
        %v1580 = vpop.trf.xlu0
        %1581 = vxpose.xlu0.c.b16.start [1/8] %v1539, 128
        %1582 = vxpose.xlu0.c.b16.cont [2/8] 0, 128
        %1583 = vxpose.xlu0.c.b16.cont [3/8] 0, 128
        %1584 = vxpose.xlu0.c.b16.cont [4/8] 0, 128
        %1585 = vxpose.xlu0.c.b16.cont [5/8] 0, 128
        %1586 = vxpose.xlu0.c.b16.cont [6/8] 0, 128
        %1587 = vxpose.xlu0.c.b16.cont [7/8] 0, 128
        %1588 = vxpose.xlu0.c.b16.end [8/8] 0, 128
        %v1589 = vpop.trf.xlu0
        %v1590 = vpop.trf.xlu0
        %v1591 = vpop.trf.xlu0
        %v1592 = vpop.trf.xlu0
        %v1593 = vpop.trf.xlu0
        %v1594 = vpop.trf.xlu0
        %v1595 = vpop.trf.xlu0
        %v1596 = vpop.trf.xlu0
        %1597 = vxpose.xlu0.c.b16.start [1/8] %v1543, 128
        %1598 = vxpose.xlu0.c.b16.cont [2/8] 0, 128
        %1599 = vxpose.xlu0.c.b16.cont [3/8] 0, 128
        %1600 = vxpose.xlu0.c.b16.cont [4/8] 0, 128
        %1601 = vxpose.xlu0.c.b16.cont [5/8] 0, 128
        %1602 = vxpose.xlu0.c.b16.cont [6/8] 0, 128
        %1603 = vxpose.xlu0.c.b16.cont [7/8] 0, 128
        %1604 = vxpose.xlu0.c.b16.end [8/8] 0, 128
        %v1605 = vpop.trf.xlu0
        %v1606 = vpop.trf.xlu0
        %v1607 = vpop.trf.xlu0
        %v1608 = vpop.trf.xlu0
        %v1609 = vpop.trf.xlu0
        %v1610 = vpop.trf.xlu0
        %v1611 = vpop.trf.xlu0
        %v1612 = vpop.trf.xlu0
        %1613 = vxpose.xlu0.c.b16.start [1/8] %v1547, 128
        %1614 = vxpose.xlu0.c.b16.cont [2/8] 0, 128
        %1615 = vxpose.xlu0.c.b16.cont [3/8] 0, 128
        %1616 = vxpose.xlu0.c.b16.cont [4/8] 0, 128
        %1617 = vxpose.xlu0.c.b16.cont [5/8] 0, 128
        %1618 = vxpose.xlu0.c.b16.cont [6/8] 0, 128
        %1619 = vxpose.xlu0.c.b16.cont [7/8] 0, 128
        %1620 = vxpose.xlu0.c.b16.end [8/8] 0, 128
        %v1621 = vpop.trf.xlu0
        %v1622 = vpop.trf.xlu0
        %v1623 = vpop.trf.xlu0
        %v1624 = vpop.trf.xlu0
        %v1625 = vpop.trf.xlu0
        %v1626 = vpop.trf.xlu0
        %v1627 = vpop.trf.xlu0
        %v1628 = vpop.trf.xlu0
        %1629 = vxpose.xlu0.c.b16.start [1/8] %v1551, 128
        %1630 = vxpose.xlu0.c.b16.cont [2/8] 0, 128
        %1631 = vxpose.xlu0.c.b16.cont [3/8] 0, 128
        %1632 = vxpose.xlu0.c.b16.cont [4/8] 0, 128
        %1633 = vxpose.xlu0.c.b16.cont [5/8] 0, 128
        %1634 = vxpose.xlu0.c.b16.cont [6/8] 0, 128
        %1635 = vxpose.xlu0.c.b16.cont [7/8] 0, 128
        %1636 = vxpose.xlu0.c.b16.end [8/8] 0, 128
        %v1637 = vpop.trf.xlu0
        %v1638 = vpop.trf.xlu0
        %v1639 = vpop.trf.xlu0
        %v1640 = vpop.trf.xlu0
        %v1641 = vpop.trf.xlu0
        %v1642 = vpop.trf.xlu0
        %v1643 = vpop.trf.xlu0
        %v1644 = vpop.trf.xlu0
        %1645 = vxpose.xlu0.c.b16.start [1/8] %v1555, 128
        %1646 = vxpose.xlu0.c.b16.cont [2/8] 0, 128
        %1647 = vxpose.xlu0.c.b16.cont [3/8] 0, 128
        %1648 = vxpose.xlu0.c.b16.cont [4/8] 0, 128
        %1649 = vxpose.xlu0.c.b16.cont [5/8] 0, 128
        %1650 = vxpose.xlu0.c.b16.cont [6/8] 0, 128
        %1651 = vxpose.xlu0.c.b16.cont [7/8] 0, 128
        %1652 = vxpose.xlu0.c.b16.end [8/8] 0, 128
        %v1653 = vpop.trf.xlu0
        %v1654 = vpop.trf.xlu0
        %v1655 = vpop.trf.xlu0
        %v1656 = vpop.trf.xlu0
        %v1657 = vpop.trf.xlu0
        %v1658 = vpop.trf.xlu0
        %v1659 = vpop.trf.xlu0
        %v1660 = vpop.trf.xlu0
        %1661 = vxpose.xlu0.c.b16.start [1/8] %v1559, 128
        %1662 = vxpose.xlu0.c.b16.cont [2/8] 0, 128
        %1663 = vxpose.xlu0.c.b16.cont [3/8] 0, 128
        %1664 = vxpose.xlu0.c.b16.cont [4/8] 0, 128
        %1665 = vxpose.xlu0.c.b16.cont [5/8] 0, 128
        %1666 = vxpose.xlu0.c.b16.cont [6/8] 0, 128
        %1667 = vxpose.xlu0.c.b16.cont [7/8] 0, 128
        %1668 = vxpose.xlu0.c.b16.end [8/8] 0, 128
        %v1669 = vpop.trf.xlu0
        %v1670 = vpop.trf.xlu0
        %v1671 = vpop.trf.xlu0
        %v1672 = vpop.trf.xlu0
        %v1673 = vpop.trf.xlu0
        %v1674 = vpop.trf.xlu0
        %v1675 = vpop.trf.xlu0
        %v1676 = vpop.trf.xlu0
        %1677 = vxpose.xlu0.c.b16.start [1/8] %v1563, 128
        %1678 = vxpose.xlu0.c.b16.cont [2/8] 0, 128
        %1679 = vxpose.xlu0.c.b16.cont [3/8] 0, 128
        %1680 = vxpose.xlu0.c.b16.cont [4/8] 0, 128
        %1681 = vxpose.xlu0.c.b16.cont [5/8] 0, 128
        %1682 = vxpose.xlu0.c.b16.cont [6/8] 0, 128
        %1683 = vxpose.xlu0.c.b16.cont [7/8] 0, 128
        %1684 = vxpose.xlu0.c.b16.end [8/8] 0, 128
        %v1685 = vpop.trf.xlu0
        %v1686 = vpop.trf.xlu0
        %v1687 = vpop.trf.xlu0
        %v1688 = vpop.trf.xlu0
        %v1689 = vpop.trf.xlu0
        %v1690 = vpop.trf.xlu0
        %v1691 = vpop.trf.xlu0
        %v1692 = vpop.trf.xlu0
        %v1693 = vcombine.low %v1573, %v1637
        %v1695 = vunpack.c.l.s4 1983009808
        %v1696 = vunpack.c.0.s8 %v1695
        %v1697 = vlaneseq
        %v1698 = vshrl.u32 %v1697, 7
        %v1699 = vsub.s32 %v1696, %v1698
        %v1700 = vrot.slane %v1693, %v1699
        %v1701 = vcombine.low %v1605, %v1669
        %v1703 = vunpack.c.l.s4 1983009808
        %v1704 = vunpack.c.0.s8 %v1703
        %v1705 = vlaneseq
        %v1706 = vshrl.u32 %v1705, 7
        %v1707 = vsub.s32 %v1704, %v1706
        %v1708 = vrot.slane %v1701, %v1707
        %v1709 = vcombine.low %v1700, %v1708
        %v1711 = vunpack.c.l.s4 1934713408
        %v1712 = vunpack.c.0.s8 %v1711
        %v1713 = vlaneseq
        %v1714 = vshrl.u32 %v1713, 7
        %v1715 = vsub.s32 %v1712, %v1714
        %v1716 = vrot.slane %v1709, %v1715
        %v1717 = vcombine.high %v1716, 0
        %v1718 = vcombine.low %v1589, %v1653
        %v1720 = vunpack.c.l.s4 1983009808
        %v1721 = vunpack.c.0.s8 %v1720
        %v1722 = vlaneseq
        %v1723 = vshrl.u32 %v1722, 7
        %v1724 = vsub.s32 %v1721, %v1723
        %v1725 = vrot.slane %v1718, %v1724
        %v1726 = vcombine.low %v1621, %v1685
        %v1728 = vunpack.c.l.s4 1983009808
        %v1729 = vunpack.c.0.s8 %v1728
        %v1730 = vlaneseq
        %v1731 = vshrl.u32 %v1730, 7
        %v1732 = vsub.s32 %v1729, %v1731
        %v1733 = vrot.slane %v1726, %v1732
        %v1734 = vcombine.low %v1725, %v1733
        %v1736 = vunpack.c.l.s4 1934713408
        %v1737 = vunpack.c.0.s8 %v1736
        %v1738 = vlaneseq
        %v1739 = vshrl.u32 %v1738, 7
        %v1740 = vsub.s32 %v1737, %v1739
        %v1741 = vrot.slane %v1734, %v1740
        %v1742 = vcombine.high %v1741, 0
        %v1745 = vpack.i.b16 %v1741, %v1716
        %v1746 = vshrl.u32 %v1716, 16
        %v1747 = vshrl.u32 %v1741, 16
        %v1748 = vpack.i.b16 %v1747, %v1746
        %v1751 = vpack.i.b16 %v1742, %v1717
        %v1752 = vshrl.u32 %v1717, 16
        %v1753 = vshrl.u32 %v1742, 16
        %v1754 = vpack.i.b16 %v1753, %v1752
        %v1756 = vsel %vm1103, %v1745, 0
        %v1759 = vsel %vm1103, %v1333, 0
        %1761 = vmatprep.subr.bf16.mxu0 0
        %1762 = vmatpush1.bf16.xpose.msra.mxu0 %v1759
        %1763 = vmatprep.subr.bf16.mxu0 0
        %1764 = vmatpush1.bf16.xpose.msra.mxu0 0
        %1765 = vmatprep.subr.bf16.mxu0 0
        %1766 = vmatpush1.bf16.xpose.msra.mxu0 0
        %1767 = vmatprep.subr.bf16.mxu0 0
        %1768 = vmatpush1.bf16.xpose.msra.mxu0 0
        %1769 = vmatprep.subr.bf16.mxu0 0
        %1770 = vmatpush1.bf16.xpose.msra.mxu0 0
        %1771 = vmatprep.subr.bf16.mxu0 0
        %1772 = vmatpush1.bf16.xpose.msra.mxu0 0
        %1773 = vmatprep.subr.bf16.mxu0 0
        %1774 = vmatpush1.bf16.xpose.msra.mxu0 0
        %1775 = vmatprep.subr.bf16.mxu0 0
        %1776 = vmatpush1.bf16.xpose.msra.mxu0 0
        %1777 = vmatprep.subr.bf16.mxu0 0
        %1778 = vmatpush1.bf16.xpose.msra.mxu0 0
        %1779 = vmatprep.subr.bf16.mxu0 0
        %1780 = vmatpush1.bf16.xpose.msra.mxu0 0
        %1781 = vmatprep.subr.bf16.mxu0 0
        %1782 = vmatpush1.bf16.xpose.msra.mxu0 0
        %1783 = vmatprep.subr.bf16.mxu0 0
        %1784 = vmatpush1.bf16.xpose.msra.mxu0 0
        %1785 = vmatprep.subr.bf16.mxu0 0
        %1786 = vmatpush1.bf16.xpose.msra.mxu0 0
        %1787 = vmatprep.subr.bf16.mxu0 0
        %1788 = vmatpush1.bf16.xpose.msra.mxu0 0
        %1789 = vmatprep.subr.bf16.mxu0 0
        %1790 = vmatpush1.bf16.xpose.msra.mxu0 0
        %1791 = vmatprep.subr.bf16.mxu0 0
        %1792 = vmatpush1.bf16.xpose.msra.mxu0 0
        %1793 = vmatprep.mubr.bf16.mxu0 0
        %1794 = vmatmul.mubr.bf16.gmra.mrb[0].mxu0 %v1756
        %v1795 = vpop.f32.mrb[0].mxu0
        %v1796 = vadd.f32 0.0, %v1795
        %v1797 = vpop.f32.mrb[0].mxu0
        %v1798 = vpop.f32.mrb[0].mxu0
        %v1799 = vpop.f32.mrb[0].mxu0
        %1800 = vdwg.mxu0
        %v1802 = vsel %vm1103, %v1748, 0
        %v1805 = vsel %vm1103, %v1334, 0
        %1807 = vmatprep.subr.bf16.mxu0 0
        %1808 = vmatpush1.bf16.xpose.msra.mxu0 %v1805
        %1809 = vmatprep.subr.bf16.mxu0 0
        %1810 = vmatpush1.bf16.xpose.msra.mxu0 0
        %1811 = vmatprep.subr.bf16.mxu0 0
        %1812 = vmatpush1.bf16.xpose.msra.mxu0 0
        %1813 = vmatprep.subr.bf16.mxu0 0
        %1814 = vmatpush1.bf16.xpose.msra.mxu0 0
        %1815 = vmatprep.subr.bf16.mxu0 0
        %1816 = vmatpush1.bf16.xpose.msra.mxu0 0
        %1817 = vmatprep.subr.bf16.mxu0 0
        %1818 = vmatpush1.bf16.xpose.msra.mxu0 0
        %1819 = vmatprep.subr.bf16.mxu0 0
        %1820 = vmatpush1.bf16.xpose.msra.mxu0 0
        %1821 = vmatprep.subr.bf16.mxu0 0
        %1822 = vmatpush1.bf16.xpose.msra.mxu0 0
        %1823 = vmatprep.subr.bf16.mxu0 0
        %1824 = vmatpush1.bf16.xpose.msra.mxu0 0
        %1825 = vmatprep.subr.bf16.mxu0 0
        %1826 = vmatpush1.bf16.xpose.msra.mxu0 0
        %1827 = vmatprep.subr.bf16.mxu0 0
        %1828 = vmatpush1.bf16.xpose.msra.mxu0 0
        %1829 = vmatprep.subr.bf16.mxu0 0
        %1830 = vmatpush1.bf16.xpose.msra.mxu0 0
        %1831 = vmatprep.subr.bf16.mxu0 0
        %1832 = vmatpush1.bf16.xpose.msra.mxu0 0
        %1833 = vmatprep.subr.bf16.mxu0 0
        %1834 = vmatpush1.bf16.xpose.msra.mxu0 0
        %1835 = vmatprep.subr.bf16.mxu0 0
        %1836 = vmatpush1.bf16.xpose.msra.mxu0 0
        %1837 = vmatprep.subr.bf16.mxu0 0
        %1838 = vmatpush1.bf16.xpose.msra.mxu0 0
        %1839 = vmatprep.mubr.bf16.mxu0 0
        %1840 = vmatmul.mubr.bf16.gmra.mrb[0].mxu0 %v1802
        %v1841 = vpop.f32.mrb[0].mxu0
        %v1842 = vadd.f32 0.0, %v1841
        %v1843 = vpop.f32.mrb[0].mxu0
        %v1844 = vpop.f32.mrb[0].mxu0
        %v1845 = vpop.f32.mrb[0].mxu0
        %1846 = vdwg.mxu0
        %v1848 = vsel %vm1103, %v1751, 0
        %v1851 = vsel %vm1103, %v1335, 0
        %1853 = vmatprep.subr.bf16.mxu0 0
        %1854 = vmatpush1.bf16.xpose.msra.mxu0 %v1851
        %1855 = vmatprep.subr.bf16.mxu0 0
        %1856 = vmatpush1.bf16.xpose.msra.mxu0 0
        %1857 = vmatprep.subr.bf16.mxu0 0
        %1858 = vmatpush1.bf16.xpose.msra.mxu0 0
        %1859 = vmatprep.subr.bf16.mxu0 0
        %1860 = vmatpush1.bf16.xpose.msra.mxu0 0
        %1861 = vmatprep.subr.bf16.mxu0 0
        %1862 = vmatpush1.bf16.xpose.msra.mxu0 0
        %1863 = vmatprep.subr.bf16.mxu0 0
        %1864 = vmatpush1.bf16.xpose.msra.mxu0 0
        %1865 = vmatprep.subr.bf16.mxu0 0
        %1866 = vmatpush1.bf16.xpose.msra.mxu0 0
        %1867 = vmatprep.subr.bf16.mxu0 0
        %1868 = vmatpush1.bf16.xpose.msra.mxu0 0
        %1869 = vmatprep.subr.bf16.mxu0 0
        %1870 = vmatpush1.bf16.xpose.msra.mxu0 0
        %1871 = vmatprep.subr.bf16.mxu0 0
        %1872 = vmatpush1.bf16.xpose.msra.mxu0 0
        %1873 = vmatprep.subr.bf16.mxu0 0
        %1874 = vmatpush1.bf16.xpose.msra.mxu0 0
        %1875 = vmatprep.subr.bf16.mxu0 0
        %1876 = vmatpush1.bf16.xpose.msra.mxu0 0
        %1877 = vmatprep.subr.bf16.mxu0 0
        %1878 = vmatpush1.bf16.xpose.msra.mxu0 0
        %1879 = vmatprep.subr.bf16.mxu0 0
        %1880 = vmatpush1.bf16.xpose.msra.mxu0 0
        %1881 = vmatprep.subr.bf16.mxu0 0
        %1882 = vmatpush1.bf16.xpose.msra.mxu0 0
        %1883 = vmatprep.subr.bf16.mxu0 0
        %1884 = vmatpush1.bf16.xpose.msra.mxu0 0
        %1885 = vmatprep.mubr.bf16.mxu0 0
        %1886 = vmatmul.mubr.bf16.gmra.mrb[0].mxu0 %v1848
        %v1887 = vpop.f32.mrb[0].mxu0
        %v1888 = vadd.f32 0.0, %v1887
        %v1889 = vpop.f32.mrb[0].mxu0
        %v1890 = vpop.f32.mrb[0].mxu0
        %v1891 = vpop.f32.mrb[0].mxu0
        %1892 = vdwg.mxu0
        %v1894 = vsel %vm1103, %v1754, 0
        %v1897 = vsel %vm1103, %v1336, 0
        %1899 = vmatprep.subr.bf16.mxu0 0
        %1900 = vmatpush1.bf16.xpose.msra.mxu0 %v1897
        %1901 = vmatprep.subr.bf16.mxu0 0
        %1902 = vmatpush1.bf16.xpose.msra.mxu0 0
        %1903 = vmatprep.subr.bf16.mxu0 0
        %1904 = vmatpush1.bf16.xpose.msra.mxu0 0
        %1905 = vmatprep.subr.bf16.mxu0 0
        %1906 = vmatpush1.bf16.xpose.msra.mxu0 0
        %1907 = vmatprep.subr.bf16.mxu0 0
        %1908 = vmatpush1.bf16.xpose.msra.mxu0 0
        %1909 = vmatprep.subr.bf16.mxu0 0
        %1910 = vmatpush1.bf16.xpose.msra.mxu0 0
        %1911 = vmatprep.subr.bf16.mxu0 0
        %1912 = vmatpush1.bf16.xpose.msra.mxu0 0
        %1913 = vmatprep.subr.bf16.mxu0 0
        %1914 = vmatpush1.bf16.xpose.msra.mxu0 0
        %1915 = vmatprep.subr.bf16.mxu0 0
        %1916 = vmatpush1.bf16.xpose.msra.mxu0 0
        %1917 = vmatprep.subr.bf16.mxu0 0
        %1918 = vmatpush1.bf16.xpose.msra.mxu0 0
        %1919 = vmatprep.subr.bf16.mxu0 0
        %1920 = vmatpush1.bf16.xpose.msra.mxu0 0
        %1921 = vmatprep.subr.bf16.mxu0 0
        %1922 = vmatpush1.bf16.xpose.msra.mxu0 0
        %1923 = vmatprep.subr.bf16.mxu0 0
        %1924 = vmatpush1.bf16.xpose.msra.mxu0 0
        %1925 = vmatprep.subr.bf16.mxu0 0
        %1926 = vmatpush1.bf16.xpose.msra.mxu0 0
        %1927 = vmatprep.subr.bf16.mxu0 0
        %1928 = vmatpush1.bf16.xpose.msra.mxu0 0
        %1929 = vmatprep.subr.bf16.mxu0 0
        %1930 = vmatpush1.bf16.xpose.msra.mxu0 0
        %1931 = vmatprep.mubr.bf16.mxu0 0
        %1932 = vmatmul.mubr.bf16.gmra.mrb[0].mxu0 %v1894
        %v1933 = vpop.f32.mrb[0].mxu0
        %v1934 = vadd.f32 0.0, %v1933
        %v1935 = vpop.f32.mrb[0].mxu0
        %v1936 = vpop.f32.mrb[0].mxu0
        %v1937 = vpop.f32.mrb[0].mxu0
        %1938 = vdwg.mxu0
        %1939 = vxpose.xlu0.b32.start [1/16] %v1796, 128
        %1940 = vxpose.xlu0.b32.cont [2/16] 0.0, 128
        %1941 = vxpose.xlu0.b32.cont [3/16] 0.0, 128
        %1942 = vxpose.xlu0.b32.cont [4/16] 0.0, 128
        %1943 = vxpose.xlu0.b32.cont [5/16] 0.0, 128
        %1944 = vxpose.xlu0.b32.cont [6/16] 0.0, 128
        %1945 = vxpose.xlu0.b32.cont [7/16] 0.0, 128
        %1946 = vxpose.xlu0.b32.cont [8/16] 0.0, 128
        %1947 = vxpose.xlu0.b32.cont [9/16] 0.0, 128
        %1948 = vxpose.xlu0.b32.cont [10/16] 0.0, 128
        %1949 = vxpose.xlu0.b32.cont [11/16] 0.0, 128
        %1950 = vxpose.xlu0.b32.cont [12/16] 0.0, 128
        %1951 = vxpose.xlu0.b32.cont [13/16] 0.0, 128
        %1952 = vxpose.xlu0.b32.cont [14/16] 0.0, 128
        %1953 = vxpose.xlu0.b32.cont [15/16] 0.0, 128
        %1954 = vxpose.xlu0.b32.end [16/16] 0.0, 128
        %v1955 = vpop.trf.xlu0
        %v1956 = vpop.trf.xlu0
        %v1957 = vpop.trf.xlu0
        %v1958 = vpop.trf.xlu0
        %v1959 = vpop.trf.xlu0
        %v1960 = vpop.trf.xlu0
        %v1961 = vpop.trf.xlu0
        %v1962 = vpop.trf.xlu0
        %v1963 = vpop.trf.xlu0
        %v1964 = vpop.trf.xlu0
        %v1965 = vpop.trf.xlu0
        %v1966 = vpop.trf.xlu0
        %v1967 = vpop.trf.xlu0
        %v1968 = vpop.trf.xlu0
        %v1969 = vpop.trf.xlu0
        %v1970 = vpop.trf.xlu0
        %1971 = vxpose.xlu0.b32.start [1/16] %v1842, 128
        %1972 = vxpose.xlu0.b32.cont [2/16] 0.0, 128
        %1973 = vxpose.xlu0.b32.cont [3/16] 0.0, 128
        %1974 = vxpose.xlu0.b32.cont [4/16] 0.0, 128
        %1975 = vxpose.xlu0.b32.cont [5/16] 0.0, 128
        %1976 = vxpose.xlu0.b32.cont [6/16] 0.0, 128
        %1977 = vxpose.xlu0.b32.cont [7/16] 0.0, 128
        %1978 = vxpose.xlu0.b32.cont [8/16] 0.0, 128
        %1979 = vxpose.xlu0.b32.cont [9/16] 0.0, 128
        %1980 = vxpose.xlu0.b32.cont [10/16] 0.0, 128
        %1981 = vxpose.xlu0.b32.cont [11/16] 0.0, 128
        %1982 = vxpose.xlu0.b32.cont [12/16] 0.0, 128
        %1983 = vxpose.xlu0.b32.cont [13/16] 0.0, 128
        %1984 = vxpose.xlu0.b32.cont [14/16] 0.0, 128
        %1985 = vxpose.xlu0.b32.cont [15/16] 0.0, 128
        %1986 = vxpose.xlu0.b32.end [16/16] 0.0, 128
        %v1987 = vpop.trf.xlu0
        %v1988 = vpop.trf.xlu0
        %v1989 = vpop.trf.xlu0
        %v1990 = vpop.trf.xlu0
        %v1991 = vpop.trf.xlu0
        %v1992 = vpop.trf.xlu0
        %v1993 = vpop.trf.xlu0
        %v1994 = vpop.trf.xlu0
        %v1995 = vpop.trf.xlu0
        %v1996 = vpop.trf.xlu0
        %v1997 = vpop.trf.xlu0
        %v1998 = vpop.trf.xlu0
        %v1999 = vpop.trf.xlu0
        %v2000 = vpop.trf.xlu0
        %v2001 = vpop.trf.xlu0
        %v2002 = vpop.trf.xlu0
        %2003 = vxpose.xlu0.b32.start [1/16] %v1888, 128
        %2004 = vxpose.xlu0.b32.cont [2/16] 0.0, 128
        %2005 = vxpose.xlu0.b32.cont [3/16] 0.0, 128
        %2006 = vxpose.xlu0.b32.cont [4/16] 0.0, 128
        %2007 = vxpose.xlu0.b32.cont [5/16] 0.0, 128
        %2008 = vxpose.xlu0.b32.cont [6/16] 0.0, 128
        %2009 = vxpose.xlu0.b32.cont [7/16] 0.0, 128
        %2010 = vxpose.xlu0.b32.cont [8/16] 0.0, 128
        %2011 = vxpose.xlu0.b32.cont [9/16] 0.0, 128
        %2012 = vxpose.xlu0.b32.cont [10/16] 0.0, 128
        %2013 = vxpose.xlu0.b32.cont [11/16] 0.0, 128
        %2014 = vxpose.xlu0.b32.cont [12/16] 0.0, 128
        %2015 = vxpose.xlu0.b32.cont [13/16] 0.0, 128
        %2016 = vxpose.xlu0.b32.cont [14/16] 0.0, 128
        %2017 = vxpose.xlu0.b32.cont [15/16] 0.0, 128
        %2018 = vxpose.xlu0.b32.end [16/16] 0.0, 128
        %v2019 = vpop.trf.xlu0
        %v2020 = vpop.trf.xlu0
        %v2021 = vpop.trf.xlu0
        %v2022 = vpop.trf.xlu0
        %v2023 = vpop.trf.xlu0
        %v2024 = vpop.trf.xlu0
        %v2025 = vpop.trf.xlu0
        %v2026 = vpop.trf.xlu0
        %v2027 = vpop.trf.xlu0
        %v2028 = vpop.trf.xlu0
        %v2029 = vpop.trf.xlu0
        %v2030 = vpop.trf.xlu0
        %v2031 = vpop.trf.xlu0
        %v2032 = vpop.trf.xlu0
        %v2033 = vpop.trf.xlu0
        %v2034 = vpop.trf.xlu0
        %2035 = vxpose.xlu0.b32.start [1/16] %v1934, 128
        %2036 = vxpose.xlu0.b32.cont [2/16] 0.0, 128
        %2037 = vxpose.xlu0.b32.cont [3/16] 0.0, 128
        %2038 = vxpose.xlu0.b32.cont [4/16] 0.0, 128
        %2039 = vxpose.xlu0.b32.cont [5/16] 0.0, 128
        %2040 = vxpose.xlu0.b32.cont [6/16] 0.0, 128
        %2041 = vxpose.xlu0.b32.cont [7/16] 0.0, 128
        %2042 = vxpose.xlu0.b32.cont [8/16] 0.0, 128
        %2043 = vxpose.xlu0.b32.cont [9/16] 0.0, 128
        %2044 = vxpose.xlu0.b32.cont [10/16] 0.0, 128
        %2045 = vxpose.xlu0.b32.cont [11/16] 0.0, 128
        %2046 = vxpose.xlu0.b32.cont [12/16] 0.0, 128
        %2047 = vxpose.xlu0.b32.cont [13/16] 0.0, 128
        %2048 = vxpose.xlu0.b32.cont [14/16] 0.0, 128
        %2049 = vxpose.xlu0.b32.cont [15/16] 0.0, 128
        %2050 = vxpose.xlu0.b32.end [16/16] 0.0, 128
        %v2051 = vpop.trf.xlu0
        %v2052 = vpop.trf.xlu0
        %v2053 = vpop.trf.xlu0
        %v2054 = vpop.trf.xlu0
        %v2055 = vpop.trf.xlu0
        %v2056 = vpop.trf.xlu0
        %v2057 = vpop.trf.xlu0
        %v2058 = vpop.trf.xlu0
        %v2059 = vpop.trf.xlu0
        %v2060 = vpop.trf.xlu0
        %v2061 = vpop.trf.xlu0
        %v2062 = vpop.trf.xlu0
        %v2063 = vpop.trf.xlu0
        %v2064 = vpop.trf.xlu0
        %v2065 = vpop.trf.xlu0
        %v2066 = vpop.trf.xlu0
        %v2067 = vcombine.low %v1955, %v2019
        %v2068 = vcombine.high %v1955, %v2019
        %v2070 = vunpack.c.l.s4 1983009808
        %v2071 = vunpack.c.0.s8 %v2070
        %v2072 = vlaneseq
        %v2073 = vshrl.u32 %v2072, 7
        %v2074 = vsub.s32 %v2071, %v2073
        %v2075 = vrot.slane %v2067, %v2074
        %v2077 = vunpack.c.l.s4 1983009808
        %v2078 = vunpack.c.0.s8 %v2077
        %v2079 = vlaneseq
        %v2080 = vshrl.u32 %v2079, 7
        %v2081 = vsub.s32 %v2078, %v2080
        %v2082 = vrot.slane %v2068, %v2081
        %v2083 = vcombine.low %v1987, %v2051
        %v2084 = vcombine.high %v1987, %v2051
        %v2086 = vunpack.c.l.s4 1983009808
        %v2087 = vunpack.c.0.s8 %v2086
        %v2088 = vlaneseq
        %v2089 = vshrl.u32 %v2088, 7
        %v2090 = vsub.s32 %v2087, %v2089
        %v2091 = vrot.slane %v2083, %v2090
        %v2093 = vunpack.c.l.s4 1983009808
        %v2094 = vunpack.c.0.s8 %v2093
        %v2095 = vlaneseq
        %v2096 = vshrl.u32 %v2095, 7
        %v2097 = vsub.s32 %v2094, %v2096
        %v2098 = vrot.slane %v2084, %v2097
        %v2099 = vcombine.low %v2075, %v2091
        %v2100 = vcombine.high %v2075, %v2091
        %v2102 = vunpack.c.l.s4 1934713408
        %v2103 = vunpack.c.0.s8 %v2102
        %v2104 = vlaneseq
        %v2105 = vshrl.u32 %v2104, 7
        %v2106 = vsub.s32 %v2103, %v2105
        %v2107 = vrot.slane %v2099, %v2106
        %v2109 = vunpack.c.l.s4 1934713408
        %v2110 = vunpack.c.0.s8 %v2109
        %v2111 = vlaneseq
        %v2112 = vshrl.u32 %v2111, 7
        %v2113 = vsub.s32 %v2110, %v2112
        %v2114 = vrot.slane %v2100, %v2113
        %v2115 = vcombine.low %v2082, %v2098
        %v2116 = vcombine.high %v2082, %v2098
        %v2118 = vunpack.c.l.s4 1934713408
        %v2119 = vunpack.c.0.s8 %v2118
        %v2120 = vlaneseq
        %v2121 = vshrl.u32 %v2120, 7
        %v2122 = vsub.s32 %v2119, %v2121
        %v2123 = vrot.slane %v2115, %v2122
        %v2125 = vunpack.c.l.s4 1934713408
        %v2126 = vunpack.c.0.s8 %v2125
        %v2127 = vlaneseq
        %v2128 = vshrl.u32 %v2127, 7
        %v2129 = vsub.s32 %v2126, %v2128
        %v2130 = vrot.slane %v2116, %v2129
        %v2131 = vcombine.high %v2107, 0.0
        %v2132 = vcombine.high %v2114, 0.0
        %v2133 = vcombine.high %v2123, 0.0
        %v2134 = vcombine.high %v2130, 0.0
        %v2135 = vcombine.low %v2107, %v2114
        %v2137 = vunpack.c.l.s4 1983009808
        %v2138 = vunpack.c.0.s8 %v2137
        %v2139 = vlaneseq
        %v2140 = vshrl.u32 %v2139, 7
        %v2141 = vsub.s32 %v2138, %v2140
        %v2142 = vrot.slane %v2135, %v2141
        %v2143 = vcombine.low %v2131, %v2132
        %v2145 = vunpack.c.l.s4 1983009808
        %v2146 = vunpack.c.0.s8 %v2145
        %v2147 = vlaneseq
        %v2148 = vshrl.u32 %v2147, 7
        %v2149 = vsub.s32 %v2146, %v2148
        %v2150 = vrot.slane %v2143, %v2149
        %v2151 = vcombine.low %v2123, %v2130
        %v2153 = vunpack.c.l.s4 1983009808
        %v2154 = vunpack.c.0.s8 %v2153
        %v2155 = vlaneseq
        %v2156 = vshrl.u32 %v2155, 7
        %v2157 = vsub.s32 %v2154, %v2156
        %v2158 = vrot.slane %v2151, %v2157
        %v2159 = vcombine.low %v2133, %v2134
        %v2161 = vunpack.c.l.s4 1983009808
        %v2162 = vunpack.c.0.s8 %v2161
        %v2163 = vlaneseq
        %v2164 = vshrl.u32 %v2163, 7
        %v2165 = vsub.s32 %v2162, %v2164
        %v2166 = vrot.slane %v2159, %v2165
        %v2167 = vcombine.low %v2142, %v2150
        %v2168 = vcombine.high %v2142, %v2150
        %v2170 = vunpack.c.l.s4 1934713408
        %v2171 = vunpack.c.0.s8 %v2170
        %v2172 = vlaneseq
        %v2173 = vshrl.u32 %v2172, 7
        %v2174 = vsub.s32 %v2171, %v2173
        %v2175 = vrot.slane %v2167, %v2174
        %v2177 = vunpack.c.l.s4 1934713408
        %v2178 = vunpack.c.0.s8 %v2177
        %v2179 = vlaneseq
        %v2180 = vshrl.u32 %v2179, 7
        %v2181 = vsub.s32 %v2178, %v2180
        %v2182 = vrot.slane %v2168, %v2181
        %v2183 = vcombine.low %v2158, %v2166
        %v2184 = vcombine.high %v2158, %v2166
        %v2186 = vunpack.c.l.s4 1934713408
        %v2187 = vunpack.c.0.s8 %v2186
        %v2188 = vlaneseq
        %v2189 = vshrl.u32 %v2188, 7
        %v2190 = vsub.s32 %v2187, %v2189
        %v2191 = vrot.slane %v2183, %v2190
        %v2193 = vunpack.c.l.s4 1934713408
        %v2194 = vunpack.c.0.s8 %v2193
        %v2195 = vlaneseq
        %v2196 = vshrl.u32 %v2195, 7
        %v2197 = vsub.s32 %v2194, %v2196
        %v2198 = vrot.slane %v2184, %v2197
        %v2199 = vcombine.low %v2175, %v2191
        %v2200 = vcombine.high %v2175, %v2191
        %v2201 = vcombine.low %v2182, %v2198
        %v2202 = vcombine.high %v2182, %v2198
        %2204 = vrot.lane.b32.xlu0 %v2200, 8
        %v2205 = vpop.permute.xlu0 %2204
        %2208 = vrot.lane.b32.xlu0 %v2201, 16
        %v2209 = vpop.permute.xlu0 %2208
        %2212 = vrot.lane.b32.xlu0 %v2202, 24
        %v2213 = vpop.permute.xlu0 %2212
        %v2215 = vsel %vm1103, %v2199, %v2205
        %vm2216 = vcmask 130048
        %v2217 = vsel %vm2216, %v2215, %v2209
        %vm2218 = vcmask 195584
        %v2219 = vsel %vm2218, %v2217, %v2213
        %v2220 = vpack.c.bf16 %v2219, %v2219
        %v2221 = vld [vmem:[#allocation7] sm:$0xf]
        %v2222 = vld [vmem:[#allocation7 + $0x4] sm:$0xf]
        %v2223 = vld [vmem:[#allocation7 + $0x8] sm:$0xf]
        %v2224 = vld [vmem:[#allocation7 + $0xc] sm:$0xf]
        %v2225 = vld [vmem:[%s4] sm:$0x1]
        %v2227 = vlaneseq
        %v2228 = vshrl.u32 %v2227, 7
        %v2229 = vsub.s32 0, %v2228
        %v2230 = vrot.slane %v2225, %v2229
        %v2236 = vunpack.c.l.b16 %v2221
        %v2237 = vunpack.c.l.b16 %v2222
        %v2238 = vunpack.c.l.b16 %v2223
        %v2239 = vunpack.c.l.b16 %v2224
        %v2240 = vpack.c.b16 %v2237, %v2236
        %v2241 = vpack.c.b16 %v2239, %v2238
        %v2245 = vsel %vm309, %v2220, 0
        %2247 = vmatprep.subr.bf16.mxu0 0
        %2248 = vmatpush1.bf16.msra.mxu0 %v2240
        %2249 = vmatprep.subr.bf16.mxu0 0
        %2250 = vmatpush1.bf16.msra.mxu0 %v2241
        %2251 = vmatprep.subr.bf16.mxu0 0
        %2252 = vmatpush1.bf16.msra.mxu0 0
        %2253 = vmatprep.subr.bf16.mxu0 0
        %2254 = vmatpush1.bf16.msra.mxu0 0
        %2255 = vmatprep.subr.bf16.mxu0 0
        %2256 = vmatpush1.bf16.msra.mxu0 0
        %2257 = vmatprep.subr.bf16.mxu0 0
        %2258 = vmatpush1.bf16.msra.mxu0 0
        %2259 = vmatprep.subr.bf16.mxu0 0
        %2260 = vmatpush1.bf16.msra.mxu0 0
        %2261 = vmatprep.subr.bf16.mxu0 0
        %2262 = vmatpush1.bf16.msra.mxu0 0
        %2263 = vmatprep.subr.bf16.mxu0 0
        %2264 = vmatpush1.bf16.msra.mxu0 0
        %2265 = vmatprep.subr.bf16.mxu0 0
        %2266 = vmatpush1.bf16.msra.mxu0 0
        %2267 = vmatprep.subr.bf16.mxu0 0
        %2268 = vmatpush1.bf16.msra.mxu0 0
        %2269 = vmatprep.subr.bf16.mxu0 0
        %2270 = vmatpush1.bf16.msra.mxu0 0
        %2271 = vmatprep.subr.bf16.mxu0 0
        %2272 = vmatpush1.bf16.msra.mxu0 0
        %2273 = vmatprep.subr.bf16.mxu0 0
        %2274 = vmatpush1.bf16.msra.mxu0 0
        %2275 = vmatprep.subr.bf16.mxu0 0
        %2276 = vmatpush1.bf16.msra.mxu0 0
        %2277 = vmatprep.subr.bf16.mxu0 0
        %2278 = vmatpush1.bf16.msra.mxu0 0
        %2279 = vmatprep.mubr.bf16.mxu0 0
        %2280 = vmatmul.mubr.bf16.gmra.mrb[0].mxu0 %v2245
        %v2281 = vpop.f32.mrb[0].mxu0
        %v2282 = vadd.f32 %v2230, %v2281
        %v2283 = vpop.f32.mrb[0].mxu0
        %v2284 = vpop.f32.mrb[0].mxu0
        %v2285 = vpop.f32.mrb[0].mxu0
        %2286 = vdwg.mxu0
        %2287 = vst.msk [vmem:[%s282] sm:$0xff] %vm309, %v2282
        %s2288 = sand.u32 %s155, 1
        %s2289 = scalar_lea.sflag [#allocation4], %s2288
        %s2290 = sand.u32 %s155, 1
        %s2291 = smul.addr %s2290, 8
        %s2292 = scalar_lea.vmem [#allocation8], %s2291
        // Predicated region
        $region53: #{tpu_custom_call.1} parent=39 // pred_check
          %p2293 = pneg %p165
        $region54: #{tpu_custom_call.1} parent=39 // pred_check_branch
          %2295 = sbr.rel (%p2293) target = $region56
        $region55: #{tpu_custom_call.1} parent=39 // pred_region
          %s2297 = ssub.s32 128, 128
          %2298 = vsyncadd %s2289, %s2297
          %s2299 = sadd.s32 %s28, %s27
          %s2300 = smul.addr %s2299, 128
          %s2301 = scalar_lea.hbm %s5, %s2300
          %s2303 = sshll.u32 %s2292, 4
          %s2304 = int_to_ptr.vmem [resolvable:$true] %s2303
          %2306 = dma.vmem_to_hbm [thread:$0]  %s2304, 128, %s2301, %s2289
        $region56: #{tpu_custom_call.1} parent=39 // pred_fallthru
          _
      $region40: #{tpu_custom_call.1} parent=5 // pred_fallthru
        _
      %p2307 = scmp.le.s32.totalorder 2, %s18
      // Predicated region
      $region57: #{tpu_custom_call.1} parent=5 // pred_check
        %p2308 = pneg %p2307
      $region58: #{tpu_custom_call.1} parent=5 // pred_check_branch
        %2310 = sbr.rel (%p2308) target = $region60
      $region59: #{tpu_custom_call.1} parent=5 // pred_region
        %s2311 = ssub.s32 %s18, 2
        // Predicated region
        $region61: #{tpu_custom_call.1} parent=59 // pred_check
          %p2312 = pneg %p171
        $region62: #{tpu_custom_call.1} parent=59 // pred_check_branch
          %2314 = sbr.rel (%p2312) target = $region64
        $region63: #{tpu_custom_call.1} parent=59 // pred_region
          %s2315 = sand.u32 %s156, 1
          %s2316 = scalar_lea.sflag [#allocation4], %s2315
          %s2317 = sand.u32 %s156, 1
          %s2318 = smul.addr %s2317, 8
          %s2319 = scalar_lea.vmem [#allocation8], %s2318
          %2320 = dma.done %s2316, 128
        $region64: #{tpu_custom_call.1} parent=59 // pred_fallthru
          _
      $region60: #{tpu_custom_call.1} parent=5 // pred_fallthru
        _
    $region6: #{tpu_custom_call.1} parent=1 // loop_footer
      %s22 = sadd.s32 1, %s18
    $region7: #{tpu_custom_call.1} parent=1 // loop_footer_branch
      %17 = sbr.rel target = $region3
    $region8: #{tpu_custom_call.1} parent=1 // loop_exit
      _
    %2321 = vsyncpa [#allocation3], 1
    %s2322 = scalar_lea.sflag [#allocation3], 1
    %2323 = vsyncpa %s2322, 1
    %2324 = vsyncpa [#allocation6], 1
    %2325 = vsyncpa [#allocation4], 1
    %s2326 = scalar_lea.sflag [#allocation4], 1
    %2327 = vsyncpa %s2326, 1

</llo_original>
